<compile_context>
chip_gen: v7x
topology: tpu7x:2x2x1
jax: 0.10.0
libtpu: 0.0.40
codegen_flags: <defaults>
</compile_context>

<pallas_src>
import functools
import math

import jax
import jax.numpy as jnp
from jax.experimental import pallas as pl
from jax.experimental.pallas import tpu as pltpu

_EPS = 1e-5
_MAX_PACKED_LANES = 512          # cap on fold*C for the MXU segmented-reduce path
_MAX_BLOCK_BYTES = 512 * 1024    # per-block bytes target (86%+ of HBM roofline)


def _round_up(x, m):
    return ((x + m - 1) // m) * m


def _ln_kernel_folded(x_ref, w_ref, b_ref, seg_ref, o_ref, *, inv_c):
    # x_ref: (tr, L) lane-dense block, L = fold*C (multiple of 128).
    # seg_ref: (L, L) block-diagonal ones matrix; x @ seg broadcasts each
    # C-segment's sum to every lane of that segment (MXU does the reduction).
    x = x_ref[...].astype(jnp.float32)
    seg = seg_ref[...]
    ssum = jnp.dot(x, seg, precision=jax.lax.Precision.HIGHEST,
                   preferred_element_type=jnp.float32)
    mu = ssum * inv_c
    diff = x - mu
    ssq = jnp.dot(diff * diff, seg, precision=jax.lax.Precision.HIGHEST,
                  preferred_element_type=jnp.float32)
    inv = jax.lax.rsqrt(ssq * inv_c + _EPS)                 # EUP slot
    o_ref[...] = (diff * inv * w_ref[...] + b_ref[...]).astype(o_ref.dtype)


def _ln_kernel_plain(x_ref, w_ref, b_ref, o_ref):
    # x_ref: (tr, C) block; C is the full (unpacked) channel extent.
    x = x_ref[...].astype(jnp.float32)
    mu = jnp.mean(x, axis=-1, keepdims=True)
    diff = x - mu
    var = jnp.mean(diff * diff, axis=-1, keepdims=True)     # unbiased=False
    inv = jax.lax.rsqrt(var + _EPS)
    o_ref[...] = (diff * inv * w_ref[...] + b_ref[...]).astype(o_ref.dtype)


@functools.partial(jax.jit, static_argnames=("max_block_bytes",))
def withbias_layernorm(x, weight, bias, *, max_block_bytes=_MAX_BLOCK_BYTES):
    """WithBias_LayerNorm forward: normalize over the last axis. x: (..., C)."""
    orig_shape = x.shape
    C = orig_shape[-1]
    rows = 1
    for d in orig_shape[:-1]:
        rows *= d
    x2d = x.reshape(rows, C)

    # --- lane-dense packing: fold rows into the 128-lane axis ---------------
    if C % 128 == 0:
        fold = 1
    else:
        fold = 128 // math.gcd(C, 128)      # smallest fold with (fold*C) % 128 == 0
        if fold * C > _MAX_PACKED_LANES:    # keep the resident segment matrix small
            fold = 1
    L = fold * C

    itemsize = jnp.dtype(x.dtype).itemsize
    sublane = max(8, 32 // itemsize)        # 8 for f32, 16 for bf16, 32 for int8

    rows_f = -(-rows // fold)               # folded row count before tile padding

    # --- tile sizing: big sublane-aligned blocks, pad instead of shrinking --
    tr_cap = max(sublane,
                 (max_block_bytes // max(1, L * itemsize)) // sublane * sublane)
    tr = min(tr_cap, _round_up(rows_f, sublane))
    padded_rows_f = _round_up(rows_f, tr)
    padded_rows = padded_rows_f * fold

    if padded_rows != rows:
        x2d = jnp.pad(x2d, ((0, padded_rows - rows), (0, 0)))
    x_packed = x2d.reshape(padded_rows_f, L)

    # Pre-tile + pre-cast scale/shift so the kernel does no per-step broadcasts.
    w_packed = jnp.tile(weight.astype(jnp.float32).reshape(1, C), (1, fold))
    b_packed = jnp.tile(bias.astype(jnp.float32).reshape(1, C), (1, fold))

    grid = (padded_rows_f // tr,)
    x_spec = pl.BlockSpec((tr, L), lambda i: (i, 0))
    vec_spec = pl.BlockSpec((1, L), lambda i: (0, 0))
    out_spec = pl.BlockSpec((tr, L), lambda i: (i, 0))
    cparams = pltpu.CompilerParams(dimension_semantics=("parallel",))

    if fold > 1:
        # Block-diagonal ones matrix: seg_mat[i, j] = 1 iff i//C == j//C.
        seg_id = jnp.arange(L, dtype=jnp.int32) // C
        seg_mat = (seg_id[:, None] == seg_id[None, :]).astype(jnp.float32)
        kernel = functools.partial(_ln_kernel_folded, inv_c=1.0 / C)
        out_packed = pl.pallas_call(
            kernel,
            out_shape=jax.ShapeDtypeStruct((padded_rows_f, L), x.dtype),
            grid_spec=pltpu.PrefetchScalarGridSpec(
                num_scalar_prefetch=0,
                grid=grid,
                in_specs=[x_spec, vec_spec, vec_spec,
                          pl.BlockSpec((L, L), lambda i: (0, 0))],
                out_specs=out_spec,
            ),
            compiler_params=cparams,
        )(x_packed, w_packed, b_packed, seg_mat)
    else:
        out_packed = pl.pallas_call(
            _ln_kernel_plain,
            out_shape=jax.ShapeDtypeStruct((padded_rows_f, L), x.dtype),
            grid_spec=pltpu.PrefetchScalarGridSpec(
                num_scalar_prefetch=0,
                grid=grid,
                in_specs=[x_spec, vec_spec, vec_spec],
                out_specs=out_spec,
            ),
            compiler_params=cparams,
        )(x_packed, w_packed, b_packed)

    out = out_packed.reshape(padded_rows, C)[:rows]
    return out.reshape(orig_shape)


if __name__ == "__main__":
    key = jax.random.PRNGKey(0)
    k1, k2, k3, k4, k5 = jax.random.split(key, 5)

    def ref_ln(x, w, b):
        xf = x.astype(jnp.float32)
        mu = jnp.mean(xf, axis=-1, keepdims=True)
        var = jnp.mean((xf - mu) ** 2, axis=-1, keepdims=True)
        return ((xf - mu) / jnp.sqrt(var + 1e-5) * w + b).astype(x.dtype)

    # Case 1: DRSW-style tokens, NCHW (2, 32, 8, 8) rearranged 'b c h w -> b (h w) c'.
    B, N, C = 2, 64, 32
    x1 = jax.random.normal(k1, (B, N, C), dtype=jnp.float32)
    w1 = jnp.ones((C,), dtype=jnp.float32)    # nn.Parameter(torch.ones)
    b1 = jnp.zeros((C,), dtype=jnp.float32)   # nn.Parameter(torch.zeros)
    out1 = withbias_layernorm(x1, w1, b1)
    jax.block_until_ready(out1)
    assert out1.shape == x1.shape and out1.dtype == x1.dtype
    assert jnp.max(jnp.abs(out1 - ref_ln(x1, w1, b1))) < 2e-5

    # Case 2: awkward row count (exercises the pad-to-tile remainder path)
    # plus non-trivial weight/bias.
    x2 = jax.random.normal(k2, (3, 50, C), dtype=jnp.float32)
    w2 = 1.0 + 0.1 * jax.random.normal(k3, (C,), dtype=jnp.float32)
    b2 = 0.1 * jax.random.normal(k4, (C,), dtype=jnp.float32)
    out2 = withbias_layernorm(x2, w2, b2)
    jax.block_until_ready(out2)
    assert out2.shape == x2.shape and out2.dtype == x2.dtype
    assert jnp.max(jnp.abs(out2 - ref_ln(x2, w2, b2))) < 2e-5

    # Case 3: channel count already a multiple of 128 (plain lane-reduce path).
    C3 = 128
    x3 = jax.random.normal(k5, (2, 16, C3), dtype=jnp.float32)
    w3 = jnp.ones((C3,), dtype=jnp.float32)
    b3 = jnp.zeros((C3,), dtype=jnp.float32)
    out3 = withbias_layernorm(x3, w3, b3)
    jax.block_until_ready(out3)
    assert out3.shape == x3.shape and out3.dtype == x3.dtype
    assert jnp.max(jnp.abs(out3 - ref_ln(x3, w3, b3))) < 2e-5

    print("KERNEL_OK")
</pallas_src>

<mosaic_0001>
module attributes {stable_mosaic.version = 11 : i64} {
  func.func @_ln_kernel_folded(%arg0: i32, %arg1: memref<32x128xf32, #tpu.memory_space<vmem>>, %arg2: memref<1x128xf32, #tpu.memory_space<vmem>>, %arg3: memref<1x128xf32, #tpu.memory_space<vmem>>, %arg4: memref<128x128xf32, #tpu.memory_space<vmem>>, %arg5: memref<32x128xf32, #tpu.memory_space<vmem>>) attributes {dimension_semantics = [#tpu.dimension_semantics<parallel>], iteration_bounds = array<i64: 1>, scalar_prefetch = 0 : i64, scratch_operands = 0 : i64, tpu.core_type = #tpu.core_type<tc>, window_params = [{transform_indices = @transform_0, window_bounds = array<i64: 32, 128>}, {pipeline_mode = #tpu.pipeline_mode<synchronous>, transform_indices = @transform_1, window_bounds = array<i64: 1, 128>}, {pipeline_mode = #tpu.pipeline_mode<synchronous>, transform_indices = @transform_2, window_bounds = array<i64: 1, 128>}, {pipeline_mode = #tpu.pipeline_mode<synchronous>, transform_indices = @transform_3, window_bounds = array<i64: 128, 128>}, {transform_indices = @transform_4, window_bounds = array<i64: 32, 128>}]} {
    %c0 = arith.constant 0 : index
    %c0_0 = arith.constant 0 : index
    %0 = vector.load %arg1[%c0, %c0_0] : memref<32x128xf32, #tpu.memory_space<vmem>>, vector<32x128xf32>
    %c0_1 = arith.constant 0 : index
    %c0_2 = arith.constant 0 : index
    %1 = vector.load %arg4[%c0_1, %c0_2] : memref<128x128xf32, #tpu.memory_space<vmem>>, vector<128x128xf32>
    %cst = arith.constant dense<0.000000e+00> : vector<32x128xf32>
    %2 = tpu.matmul %0, %1, %cst {dimension_numbers = #tpu.dot_dimension_numbers<[1], [0], [0], [1], [0, 0, 1, 1], [], []>, precision = #tpu.contract_precision<fp32>} : vector<32x128xf32>, vector<128x128xf32>, vector<32x128xf32> -> vector<32x128xf32>
    %cst_3 = arith.constant 3.125000e-02 : f32
    %3 = vector.broadcast %cst_3 : f32 to vector<32x128xf32>
    %4 = arith.mulf %2, %3 : vector<32x128xf32>
    %5 = arith.subf %0, %4 : vector<32x128xf32>
    %6 = arith.mulf %5, %5 : vector<32x128xf32>
    %cst_4 = arith.constant dense<0.000000e+00> : vector<32x128xf32>
    %7 = tpu.matmul %6, %1, %cst_4 {dimension_numbers = #tpu.dot_dimension_numbers<[1], [0], [0], [1], [0, 0, 1, 1], [], []>, precision = #tpu.contract_precision<fp32>} : vector<32x128xf32>, vector<128x128xf32>, vector<32x128xf32> -> vector<32x128xf32>
    %cst_5 = arith.constant 3.125000e-02 : f32
    %8 = vector.broadcast %cst_5 : f32 to vector<32x128xf32>
    %9 = arith.mulf %7, %8 : vector<32x128xf32>
    %cst_6 = arith.constant 9.99999974E-6 : f32
    %10 = vector.broadcast %cst_6 : f32 to vector<32x128xf32>
    %11 = arith.addf %9, %10 : vector<32x128xf32>
    %12 = math.rsqrt %11 : vector<32x128xf32>
    %13 = arith.mulf %5, %12 : vector<32x128xf32>
    %c0_7 = arith.constant 0 : index
    %c0_8 = arith.constant 0 : index
    %14 = vector.load %arg2[%c0_7, %c0_8] : memref<1x128xf32, #tpu.memory_space<vmem>>, vector<1x128xf32>
    %15 = vector.broadcast %14 : vector<1x128xf32> to vector<32x128xf32>
    %16 = arith.mulf %13, %15 : vector<32x128xf32>
    %c0_9 = arith.constant 0 : index
    %c0_10 = arith.constant 0 : index
    %17 = vector.load %arg3[%c0_9, %c0_10] : memref<1x128xf32, #tpu.memory_space<vmem>>, vector<1x128xf32>
    %18 = vector.broadcast %17 : vector<1x128xf32> to vector<32x128xf32>
    %19 = arith.addf %16, %18 : vector<32x128xf32>
    %c0_11 = arith.constant 0 : index
    %c0_12 = arith.constant 0 : index
    %20 = vector.load %arg5[%c0_11, %c0_12] : memref<32x128xf32, #tpu.memory_space<vmem>>, vector<32x128xf32>
    tpu.vector_store %arg5[%c0_11, %c0_12], %19 {strides = array<i32>} : memref<32x128xf32, #tpu.memory_space<vmem>>, vector<32x128xf32>,
    return
  }
  func.func @transform_0(%arg0: i32) -> (i32, i32) {
    %c0_i32 = arith.constant 0 : i32
    %c0_i32_0 = arith.constant 0 : i32
    return %arg0, %c0_i32 : i32, i32
  }
  func.func @transform_1(%arg0: i32) -> (i32, i32) {
    %c0_i32 = arith.constant 0 : i32
    %c0_i32_0 = arith.constant 0 : i32
    %c0_i32_1 = arith.constant 0 : i32
    return %c0_i32, %c0_i32_0 : i32, i32
  }
  func.func @transform_2(%arg0: i32) -> (i32, i32) {
    %c0_i32 = arith.constant 0 : i32
    %c0_i32_0 = arith.constant 0 : i32
    %c0_i32_1 = arith.constant 0 : i32
    return %c0_i32, %c0_i32_0 : i32, i32
  }
  func.func @transform_3(%arg0: i32) -> (i32, i32) {
    %c0_i32 = arith.constant 0 : i32
    %c0_i32_0 = arith.constant 0 : i32
    %c0_i32_1 = arith.constant 0 : i32
    return %c0_i32, %c0_i32_0 : i32, i32
  }
  func.func @transform_4(%arg0: i32) -> (i32, i32) {
    %c0_i32 = arith.constant 0 : i32
    %c0_i32_0 = arith.constant 0 : i32
    return %arg0, %c0_i32 : i32, i32
  }
}

</mosaic_0001>

<llo_original>
// kernel: withbias_layernorm.1
$region0: #{withbias_layernorm.1}
  #allocation0 [shape = 'u32[]', space=smem, size = 0x4, offset = 0x4, fixed_abs, tag = 'smem constant byte address 0x4 - core index']
  #allocation1 [shape = 'u32[144,128]{1,0:T(1,128)}', space=vmem, size = 0x12000, scoped, tag = 'internal scratch']
  %s0 = inlined_call_operand.vmem [shape: f32[32,128], index: 0, kind: input, shape index: {}]
  %s1 = inlined_call_operand.vmem [shape: f32[1,128], index: 1, kind: input, shape index: {}]
  %s2 = inlined_call_operand.vmem [shape: f32[1,128], index: 2, kind: input, shape index: {}]
  %s3 = inlined_call_operand.vmem [shape: f32[128,128], index: 3, kind: input, shape index: {}]
  %s4 = inlined_call_operand.vmem [shape: f32[32,128], index: 4, kind: output, shape index: {}]
  %s5 = sld [smem:[#allocation0]]
  $region26: #{withbias_layernorm.1} parent=0
    _
  %s7 = ssub.s32 1, %s5
  %s8 = scalar_select 0, %s7, %s5
  // Predicated region
  $region2: #{withbias_layernorm.1} parent=0 // pred_check
    _
  $region3: #{withbias_layernorm.1} parent=0 // pred_check_branch
    %10 = sbr.rel (0) target = $region5
  $region4: #{withbias_layernorm.1} parent=0 // pred_region
    _
  $region5: #{withbias_layernorm.1} parent=0 // pred_fallthru
    _
  // Predicated region
  $region6: #{withbias_layernorm.1} parent=0 // pred_check
    _
  $region7: #{withbias_layernorm.1} parent=0 // pred_check_branch
    %12 = sbr.rel (0) target = $region9
  $region8: #{withbias_layernorm.1} parent=0 // pred_region
    _
  $region9: #{withbias_layernorm.1} parent=0 // pred_fallthru
    _
  // Predicated region
  $region10: #{withbias_layernorm.1} parent=0 // pred_check
    _
  $region11: #{withbias_layernorm.1} parent=0 // pred_check_branch
    %14 = sbr.rel (0) target = $region13
  $region12: #{withbias_layernorm.1} parent=0 // pred_region
    _
  $region13: #{withbias_layernorm.1} parent=0 // pred_fallthru
    _
  // Predicated region
  $region14: #{withbias_layernorm.1} parent=0 // pred_check
    _
  $region15: #{withbias_layernorm.1} parent=0 // pred_check_branch
    %16 = sbr.rel (0) target = $region17
  $region16: #{withbias_layernorm.1} parent=0 // pred_region
    _
  $region17: #{withbias_layernorm.1} parent=0 // pred_fallthru
    _
  %v17 = vld [vmem:[%s0] sm:$0xff]
  %v18 = vld [vmem:[%s0 + $0x8] sm:$0xff]
  %v19 = vld [vmem:[%s0 + $0x10] sm:$0xff]
  %v20 = vld [vmem:[%s0 + $0x18] sm:$0xff]
  %v21 = vld [vmem:[%s3] sm:$0xff]
  %v22 = vld [vmem:[%s3 + $0x8] sm:$0xff]
  %v23 = vld [vmem:[%s3 + $0x10] sm:$0xff]
  %v24 = vld [vmem:[%s3 + $0x18] sm:$0xff]
  %v25 = vld [vmem:[%s3 + $0x20] sm:$0xff]
  %v26 = vld [vmem:[%s3 + $0x28] sm:$0xff]
  %v27 = vld [vmem:[%s3 + $0x30] sm:$0xff]
  %v28 = vld [vmem:[%s3 + $0x38] sm:$0xff]
  %v29 = vld [vmem:[%s3 + $0x40] sm:$0xff]
  %v30 = vld [vmem:[%s3 + $0x48] sm:$0xff]
  %v31 = vld [vmem:[%s3 + $0x50] sm:$0xff]
  %v32 = vld [vmem:[%s3 + $0x58] sm:$0xff]
  %v33 = vld [vmem:[%s3 + $0x60] sm:$0xff]
  %v34 = vld [vmem:[%s3 + $0x68] sm:$0xff]
  %v35 = vld [vmem:[%s3 + $0x70] sm:$0xff]
  %v36 = vld [vmem:[%s3 + $0x78] sm:$0xff]
  %37 = vmatprep.subr.mxu0 0.0
  %v38 = vand.u32 %v21, 4294901760
  %39 = vmatpush1.msra.mxu0 %v38
  %40 = vmatprep.subr.mxu0 0.0
  %v41 = vand.u32 %v22, 4294901760
  %42 = vmatpush1.msra.mxu0 %v41
  %43 = vmatprep.subr.mxu0 0.0
  %v44 = vand.u32 %v23, 4294901760
  %45 = vmatpush1.msra.mxu0 %v44
  %46 = vmatprep.subr.mxu0 0.0
  %v47 = vand.u32 %v24, 4294901760
  %48 = vmatpush1.msra.mxu0 %v47
  %49 = vmatprep.subr.mxu0 0.0
  %v50 = vand.u32 %v25, 4294901760
  %51 = vmatpush1.msra.mxu0 %v50
  %52 = vmatprep.subr.mxu0 0.0
  %v53 = vand.u32 %v26, 4294901760
  %54 = vmatpush1.msra.mxu0 %v53
  %55 = vmatprep.subr.mxu0 0.0
  %v56 = vand.u32 %v27, 4294901760
  %57 = vmatpush1.msra.mxu0 %v56
  %58 = vmatprep.subr.mxu0 0.0
  %v59 = vand.u32 %v28, 4294901760
  %60 = vmatpush1.msra.mxu0 %v59
  %61 = vmatprep.subr.mxu0 0.0
  %v62 = vand.u32 %v29, 4294901760
  %63 = vmatpush1.msra.mxu0 %v62
  %64 = vmatprep.subr.mxu0 0.0
  %v65 = vand.u32 %v30, 4294901760
  %66 = vmatpush1.msra.mxu0 %v65
  %67 = vmatprep.subr.mxu0 0.0
  %v68 = vand.u32 %v31, 4294901760
  %69 = vmatpush1.msra.mxu0 %v68
  %70 = vmatprep.subr.mxu0 0.0
  %v71 = vand.u32 %v32, 4294901760
  %72 = vmatpush1.msra.mxu0 %v71
  %73 = vmatprep.subr.mxu0 0.0
  %v74 = vand.u32 %v33, 4294901760
  %75 = vmatpush1.msra.mxu0 %v74
  %76 = vmatprep.subr.mxu0 0.0
  %v77 = vand.u32 %v34, 4294901760
  %78 = vmatpush1.msra.mxu0 %v77
  %79 = vmatprep.subr.mxu0 0.0
  %v80 = vand.u32 %v35, 4294901760
  %81 = vmatpush1.msra.mxu0 %v80
  %82 = vmatprep.subr.mxu0 0.0
  %v83 = vand.u32 %v36, 4294901760
  %84 = vmatpush1.msra.mxu0 %v83
  %85 = vmatprep.subr.mxu0 0.0
  %86 = vmatpush1.msra.mxu0 0.0
  %87 = vmatprep.subr.mxu0 0.0
  %88 = vmatpush1.msra.mxu0 0.0
  %89 = vmatprep.subr.mxu0 0.0
  %90 = vmatpush1.msra.mxu0 0.0
  %91 = vmatprep.subr.mxu0 0.0
  %92 = vmatpush1.msra.mxu0 0.0
  %93 = vmatprep.subr.mxu0 0.0
  %94 = vmatpush1.msra.mxu0 0.0
  %95 = vmatprep.subr.mxu0 0.0
  %96 = vmatpush1.msra.mxu0 0.0
  %97 = vmatprep.subr.mxu0 0.0
  %98 = vmatpush1.msra.mxu0 0.0
  %99 = vmatprep.subr.mxu0 0.0
  %100 = vmatpush1.msra.mxu0 0.0
  %101 = vmatprep.subr.mxu0 0.0
  %102 = vmatpush1.msra.mxu0 0.0
  %103 = vmatprep.subr.mxu0 0.0
  %104 = vmatpush1.msra.mxu0 0.0
  %105 = vmatprep.subr.mxu0 0.0
  %106 = vmatpush1.msra.mxu0 0.0
  %107 = vmatprep.subr.mxu0 0.0
  %108 = vmatpush1.msra.mxu0 0.0
  %109 = vmatprep.subr.mxu0 0.0
  %110 = vmatpush1.msra.mxu0 0.0
  %111 = vmatprep.subr.mxu0 0.0
  %112 = vmatpush1.msra.mxu0 0.0
  %113 = vmatprep.subr.mxu0 0.0
  %114 = vmatpush1.msra.mxu0 0.0
  %115 = vmatprep.subr.mxu0 0.0
  %116 = vmatpush1.msra.mxu0 0.0
  %117 = vmatprep.mubr.f32.mxu0 0.0
  %v118 = vand.u32 %v17, 4294901760
  %v119 = vsub.f32 %v17, %v118
  %v120 = vand.u32 %v119, 4294901760
  %v121 = vsub.f32 %v119, %v120
  %v122 = vand.u32 %v121, 4294901760
  %123 = vmatmul.mubr.f32.gmra.mrb[0].mxu0 %v122
  %v124 = vpop.f32.mrb[0].mxu0
  %v125 = vadd.f32 0.0, %v124
  %v126 = vpop.f32.mrb[0].mxu0
  %127 = vmatprep.mubr.f32.mxu0 0.0
  %v128 = vand.u32 %v18, 4294901760
  %v129 = vsub.f32 %v18, %v128
  %v130 = vand.u32 %v129, 4294901760
  %v131 = vsub.f32 %v129, %v130
  %v132 = vand.u32 %v131, 4294901760
  %133 = vmatmul.mubr.f32.gmra.mrb[0].mxu0 %v132
  %v134 = vpop.f32.mrb[0].mxu0
  %v135 = vadd.f32 0.0, %v134
  %v136 = vpop.f32.mrb[0].mxu0
  %137 = vmatprep.mubr.f32.mxu0 0.0
  %v138 = vand.u32 %v19, 4294901760
  %v139 = vsub.f32 %v19, %v138
  %v140 = vand.u32 %v139, 4294901760
  %v141 = vsub.f32 %v139, %v140
  %v142 = vand.u32 %v141, 4294901760
  %143 = vmatmul.mubr.f32.gmra.mrb[0].mxu0 %v142
  %v144 = vpop.f32.mrb[0].mxu0
  %v145 = vadd.f32 0.0, %v144
  %v146 = vpop.f32.mrb[0].mxu0
  %147 = vmatprep.mubr.f32.mxu0 0.0
  %v148 = vand.u32 %v20, 4294901760
  %v149 = vsub.f32 %v20, %v148
  %v150 = vand.u32 %v149, 4294901760
  %v151 = vsub.f32 %v149, %v150
  %v152 = vand.u32 %v151, 4294901760
  %153 = vmatmul.mubr.f32.gmra.mrb[0].mxu0 %v152
  %v154 = vpop.f32.mrb[0].mxu0
  %v155 = vadd.f32 0.0, %v154
  %v156 = vpop.f32.mrb[0].mxu0
  %157 = vdwg.mxu0
  %158 = vmatprep.subr.mxu0 0.0
  %v159 = vand.u32 %v21, 4294901760
  %v160 = vsub.f32 %v21, %v159
  %v161 = vand.u32 %v160, 4294901760
  %v162 = vsub.f32 %v160, %v161
  %v163 = vand.u32 %v162, 4294901760
  %164 = vmatpush1.msra.mxu0 %v163
  %165 = vmatprep.subr.mxu0 0.0
  %v166 = vand.u32 %v22, 4294901760
  %v167 = vsub.f32 %v22, %v166
  %v168 = vand.u32 %v167, 4294901760
  %v169 = vsub.f32 %v167, %v168
  %v170 = vand.u32 %v169, 4294901760
  %171 = vmatpush1.msra.mxu0 %v170
  %172 = vmatprep.subr.mxu0 0.0
  %v173 = vand.u32 %v23, 4294901760
  %v174 = vsub.f32 %v23, %v173
  %v175 = vand.u32 %v174, 4294901760
  %v176 = vsub.f32 %v174, %v175
  %v177 = vand.u32 %v176, 4294901760
  %178 = vmatpush1.msra.mxu0 %v177
  %179 = vmatprep.subr.mxu0 0.0
  %v180 = vand.u32 %v24, 4294901760
  %v181 = vsub.f32 %v24, %v180
  %v182 = vand.u32 %v181, 4294901760
  %v183 = vsub.f32 %v181, %v182
  %v184 = vand.u32 %v183, 4294901760
  %185 = vmatpush1.msra.mxu0 %v184
  %186 = vmatprep.subr.mxu0 0.0
  %v187 = vand.u32 %v25, 4294901760
  %v188 = vsub.f32 %v25, %v187
  %v189 = vand.u32 %v188, 4294901760
  %v190 = vsub.f32 %v188, %v189
  %v191 = vand.u32 %v190, 4294901760
  %192 = vmatpush1.msra.mxu0 %v191
  %193 = vmatprep.subr.mxu0 0.0
  %v194 = vand.u32 %v26, 4294901760
  %v195 = vsub.f32 %v26, %v194
  %v196 = vand.u32 %v195, 4294901760
  %v197 = vsub.f32 %v195, %v196
  %v198 = vand.u32 %v197, 4294901760
  %199 = vmatpush1.msra.mxu0 %v198
  %200 = vmatprep.subr.mxu0 0.0
  %v201 = vand.u32 %v27, 4294901760
  %v202 = vsub.f32 %v27, %v201
  %v203 = vand.u32 %v202, 4294901760
  %v204 = vsub.f32 %v202, %v203
  %v205 = vand.u32 %v204, 4294901760
  %206 = vmatpush1.msra.mxu0 %v205
  %207 = vmatprep.subr.mxu0 0.0
  %v208 = vand.u32 %v28, 4294901760
  %v209 = vsub.f32 %v28, %v208
  %v210 = vand.u32 %v209, 4294901760
  %v211 = vsub.f32 %v209, %v210
  %v212 = vand.u32 %v211, 4294901760
  %213 = vmatpush1.msra.mxu0 %v212
  %214 = vmatprep.subr.mxu0 0.0
  %v215 = vand.u32 %v29, 4294901760
  %v216 = vsub.f32 %v29, %v215
  %v217 = vand.u32 %v216, 4294901760
  %v218 = vsub.f32 %v216, %v217
  %v219 = vand.u32 %v218, 4294901760
  %220 = vmatpush1.msra.mxu0 %v219
  %221 = vmatprep.subr.mxu0 0.0
  %v222 = vand.u32 %v30, 4294901760
  %v223 = vsub.f32 %v30, %v222
  %v224 = vand.u32 %v223, 4294901760
  %v225 = vsub.f32 %v223, %v224
  %v226 = vand.u32 %v225, 4294901760
  %227 = vmatpush1.msra.mxu0 %v226
  %228 = vmatprep.subr.mxu0 0.0
  %v229 = vand.u32 %v31, 4294901760
  %v230 = vsub.f32 %v31, %v229
  %v231 = vand.u32 %v230, 4294901760
  %v232 = vsub.f32 %v230, %v231
  %v233 = vand.u32 %v232, 4294901760
  %234 = vmatpush1.msra.mxu0 %v233
  %235 = vmatprep.subr.mxu0 0.0
  %v236 = vand.u32 %v32, 4294901760
  %v237 = vsub.f32 %v32, %v236
  %v238 = vand.u32 %v237, 4294901760
  %v239 = vsub.f32 %v237, %v238
  %v240 = vand.u32 %v239, 4294901760
  %241 = vmatpush1.msra.mxu0 %v240
  %242 = vmatprep.subr.mxu0 0.0
  %v243 = vand.u32 %v33, 4294901760
  %v244 = vsub.f32 %v33, %v243
  %v245 = vand.u32 %v244, 4294901760
  %v246 = vsub.f32 %v244, %v245
  %v247 = vand.u32 %v246, 4294901760
  %248 = vmatpush1.msra.mxu0 %v247
  %249 = vmatprep.subr.mxu0 0.0
  %v250 = vand.u32 %v34, 4294901760
  %v251 = vsub.f32 %v34, %v250
  %v252 = vand.u32 %v251, 4294901760
  %v253 = vsub.f32 %v251, %v252
  %v254 = vand.u32 %v253, 4294901760
  %255 = vmatpush1.msra.mxu0 %v254
  %256 = vmatprep.subr.mxu0 0.0
  %v257 = vand.u32 %v35, 4294901760
  %v258 = vsub.f32 %v35, %v257
  %v259 = vand.u32 %v258, 4294901760
  %v260 = vsub.f32 %v258, %v259
  %v261 = vand.u32 %v260, 4294901760
  %262 = vmatpush1.msra.mxu0 %v261
  %263 = vmatprep.subr.mxu0 0.0
  %v264 = vand.u32 %v36, 4294901760
  %v265 = vsub.f32 %v36, %v264
  %v266 = vand.u32 %v265, 4294901760
  %v267 = vsub.f32 %v265, %v266
  %v268 = vand.u32 %v267, 4294901760
  %269 = vmatpush1.msra.mxu0 %v268
  %270 = vmatprep.subr.mxu0 0.0
  %271 = vmatpush1.msra.mxu0 0.0
  %272 = vmatprep.subr.mxu0 0.0
  %273 = vmatpush1.msra.mxu0 0.0
  %274 = vmatprep.subr.mxu0 0.0
  %275 = vmatpush1.msra.mxu0 0.0
  %276 = vmatprep.subr.mxu0 0.0
  %277 = vmatpush1.msra.mxu0 0.0
  %278 = vmatprep.subr.mxu0 0.0
  %279 = vmatpush1.msra.mxu0 0.0
  %280 = vmatprep.subr.mxu0 0.0
  %281 = vmatpush1.msra.mxu0 0.0
  %282 = vmatprep.subr.mxu0 0.0
  %283 = vmatpush1.msra.mxu0 0.0
  %284 = vmatprep.subr.mxu0 0.0
  %285 = vmatpush1.msra.mxu0 0.0
  %286 = vmatprep.subr.mxu0 0.0
  %287 = vmatpush1.msra.mxu0 0.0
  %288 = vmatprep.subr.mxu0 0.0
  %289 = vmatpush1.msra.mxu0 0.0
  %290 = vmatprep.subr.mxu0 0.0
  %291 = vmatpush1.msra.mxu0 0.0
  %292 = vmatprep.subr.mxu0 0.0
  %293 = vmatpush1.msra.mxu0 0.0
  %294 = vmatprep.subr.mxu0 0.0
  %295 = vmatpush1.msra.mxu0 0.0
  %296 = vmatprep.subr.mxu0 0.0
  %297 = vmatpush1.msra.mxu0 0.0
  %298 = vmatprep.subr.mxu0 0.0
  %299 = vmatpush1.msra.mxu0 0.0
  %300 = vmatprep.subr.mxu0 0.0
  %301 = vmatpush1.msra.mxu0 0.0
  %302 = vmatprep.mubr.f32.mxu0 0.0
  %v303 = vand.u32 %v17, 4294901760
  %304 = vmatmul.mubr.f32.gmra.mrb[0].mxu0 %v303
  %v305 = vpop.f32.mrb[0].mxu0
  %v306 = vadd.f32 %v125, %v305
  %v307 = vpop.f32.mrb[0].mxu0
  %308 = vmatprep.mubr.f32.mxu0 0.0
  %v309 = vand.u32 %v18, 4294901760
  %310 = vmatmul.mubr.f32.gmra.mrb[0].mxu0 %v309
  %v311 = vpop.f32.mrb[0].mxu0
  %v312 = vadd.f32 %v135, %v311
  %v313 = vpop.f32.mrb[0].mxu0
  %314 = vmatprep.mubr.f32.mxu0 0.0
  %v315 = vand.u32 %v19, 4294901760
  %316 = vmatmul.mubr.f32.gmra.mrb[0].mxu0 %v315
  %v317 = vpop.f32.mrb[0].mxu0
  %v318 = vadd.f32 %v145, %v317
  %v319 = vpop.f32.mrb[0].mxu0
  %320 = vmatprep.mubr.f32.mxu0 0.0
  %v321 = vand.u32 %v20, 4294901760
  %322 = vmatmul.mubr.f32.gmra.mrb[0].mxu0 %v321
  %v323 = vpop.f32.mrb[0].mxu0
  %v324 = vadd.f32 %v155, %v323
  %v325 = vpop.f32.mrb[0].mxu0
  %326 = vdwg.mxu0
  %327 = vmatprep.subr.mxu0 0.0
  %v328 = vand.u32 %v21, 4294901760
  %v329 = vsub.f32 %v21, %v328
  %330 = vmatpush1.msra.mxu0 %v329
  %331 = vmatprep.subr.mxu0 0.0
  %v332 = vand.u32 %v22, 4294901760
  %v333 = vsub.f32 %v22, %v332
  %334 = vmatpush1.msra.mxu0 %v333
  %335 = vmatprep.subr.mxu0 0.0
  %v336 = vand.u32 %v23, 4294901760
  %v337 = vsub.f32 %v23, %v336
  %338 = vmatpush1.msra.mxu0 %v337
  %339 = vmatprep.subr.mxu0 0.0
  %v340 = vand.u32 %v24, 4294901760
  %v341 = vsub.f32 %v24, %v340
  %342 = vmatpush1.msra.mxu0 %v341
  %343 = vmatprep.subr.mxu0 0.0
  %v344 = vand.u32 %v25, 4294901760
  %v345 = vsub.f32 %v25, %v344
  %346 = vmatpush1.msra.mxu0 %v345
  %347 = vmatprep.subr.mxu0 0.0
  %v348 = vand.u32 %v26, 4294901760
  %v349 = vsub.f32 %v26, %v348
  %350 = vmatpush1.msra.mxu0 %v349
  %351 = vmatprep.subr.mxu0 0.0
  %v352 = vand.u32 %v27, 4294901760
  %v353 = vsub.f32 %v27, %v352
  %354 = vmatpush1.msra.mxu0 %v353
  %355 = vmatprep.subr.mxu0 0.0
  %v356 = vand.u32 %v28, 4294901760
  %v357 = vsub.f32 %v28, %v356
  %358 = vmatpush1.msra.mxu0 %v357
  %359 = vmatprep.subr.mxu0 0.0
  %v360 = vand.u32 %v29, 4294901760
  %v361 = vsub.f32 %v29, %v360
  %362 = vmatpush1.msra.mxu0 %v361
  %363 = vmatprep.subr.mxu0 0.0
  %v364 = vand.u32 %v30, 4294901760
  %v365 = vsub.f32 %v30, %v364
  %366 = vmatpush1.msra.mxu0 %v365
  %367 = vmatprep.subr.mxu0 0.0
  %v368 = vand.u32 %v31, 4294901760
  %v369 = vsub.f32 %v31, %v368
  %370 = vmatpush1.msra.mxu0 %v369
  %371 = vmatprep.subr.mxu0 0.0
  %v372 = vand.u32 %v32, 4294901760
  %v373 = vsub.f32 %v32, %v372
  %374 = vmatpush1.msra.mxu0 %v373
  %375 = vmatprep.subr.mxu0 0.0
  %v376 = vand.u32 %v33, 4294901760
  %v377 = vsub.f32 %v33, %v376
  %378 = vmatpush1.msra.mxu0 %v377
  %379 = vmatprep.subr.mxu0 0.0
  %v380 = vand.u32 %v34, 4294901760
  %v381 = vsub.f32 %v34, %v380
  %382 = vmatpush1.msra.mxu0 %v381
  %383 = vmatprep.subr.mxu0 0.0
  %v384 = vand.u32 %v35, 4294901760
  %v385 = vsub.f32 %v35, %v384
  %386 = vmatpush1.msra.mxu0 %v385
  %387 = vmatprep.subr.mxu0 0.0
  %v388 = vand.u32 %v36, 4294901760
  %v389 = vsub.f32 %v36, %v388
  %390 = vmatpush1.msra.mxu0 %v389
  %391 = vmatprep.subr.mxu0 0.0
  %392 = vmatpush1.msra.mxu0 0.0
  %393 = vmatprep.subr.mxu0 0.0
  %394 = vmatpush1.msra.mxu0 0.0
  %395 = vmatprep.subr.mxu0 0.0
  %396 = vmatpush1.msra.mxu0 0.0
  %397 = vmatprep.subr.mxu0 0.0
  %398 = vmatpush1.msra.mxu0 0.0
  %399 = vmatprep.subr.mxu0 0.0
  %400 = vmatpush1.msra.mxu0 0.0
  %401 = vmatprep.subr.mxu0 0.0
  %402 = vmatpush1.msra.mxu0 0.0
  %403 = vmatprep.subr.mxu0 0.0
  %404 = vmatpush1.msra.mxu0 0.0
  %405 = vmatprep.subr.mxu0 0.0
  %406 = vmatpush1.msra.mxu0 0.0
  %407 = vmatprep.subr.mxu0 0.0
  %408 = vmatpush1.msra.mxu0 0.0
  %409 = vmatprep.subr.mxu0 0.0
  %410 = vmatpush1.msra.mxu0 0.0
  %411 = vmatprep.subr.mxu0 0.0
  %412 = vmatpush1.msra.mxu0 0.0
  %413 = vmatprep.subr.mxu0 0.0
  %414 = vmatpush1.msra.mxu0 0.0
  %415 = vmatprep.subr.mxu0 0.0
  %416 = vmatpush1.msra.mxu0 0.0
  %417 = vmatprep.subr.mxu0 0.0
  %418 = vmatpush1.msra.mxu0 0.0
  %419 = vmatprep.subr.mxu0 0.0
  %420 = vmatpush1.msra.mxu0 0.0
  %421 = vmatprep.subr.mxu0 0.0
  %422 = vmatpush1.msra.mxu0 0.0
  %423 = vmatprep.mubr.f32.mxu0 0.0
  %v424 = vand.u32 %v17, 4294901760
  %v425 = vsub.f32 %v17, %v424
  %426 = vmatmul.mubr.f32.gmra.mrb[0].mxu0 %v425
  %v427 = vpop.f32.mrb[0].mxu0
  %v428 = vadd.f32 %v306, %v427
  %v429 = vpop.f32.mrb[0].mxu0
  %430 = vmatprep.mubr.f32.mxu0 0.0
  %v431 = vand.u32 %v18, 4294901760
  %v432 = vsub.f32 %v18, %v431
  %433 = vmatmul.mubr.f32.gmra.mrb[0].mxu0 %v432
  %v434 = vpop.f32.mrb[0].mxu0
  %v435 = vadd.f32 %v312, %v434
  %v436 = vpop.f32.mrb[0].mxu0
  %437 = vmatprep.mubr.f32.mxu0 0.0
  %v438 = vand.u32 %v19, 4294901760
  %v439 = vsub.f32 %v19, %v438
  %440 = vmatmul.mubr.f32.gmra.mrb[0].mxu0 %v439
  %v441 = vpop.f32.mrb[0].mxu0
  %v442 = vadd.f32 %v318, %v441
  %v443 = vpop.f32.mrb[0].mxu0
  %444 = vmatprep.mubr.f32.mxu0 0.0
  %v445 = vand.u32 %v20, 4294901760
  %v446 = vsub.f32 %v20, %v445
  %447 = vmatmul.mubr.f32.gmra.mrb[0].mxu0 %v446
  %v448 = vpop.f32.mrb[0].mxu0
  %v449 = vadd.f32 %v324, %v448
  %v450 = vpop.f32.mrb[0].mxu0
  %451 = vdwg.mxu0
  %452 = vmatprep.subr.mxu0 0.0
  %v453 = vand.u32 %v21, 4294901760
  %454 = vmatpush1.msra.mxu0 %v453
  %455 = vmatprep.subr.mxu0 0.0
  %v456 = vand.u32 %v22, 4294901760
  %457 = vmatpush1.msra.mxu0 %v456
  %458 = vmatprep.subr.mxu0 0.0
  %v459 = vand.u32 %v23, 4294901760
  %460 = vmatpush1.msra.mxu0 %v459
  %461 = vmatprep.subr.mxu0 0.0
  %v462 = vand.u32 %v24, 4294901760
  %463 = vmatpush1.msra.mxu0 %v462
  %464 = vmatprep.subr.mxu0 0.0
  %v465 = vand.u32 %v25, 4294901760
  %466 = vmatpush1.msra.mxu0 %v465
  %467 = vmatprep.subr.mxu0 0.0
  %v468 = vand.u32 %v26, 4294901760
  %469 = vmatpush1.msra.mxu0 %v468
  %470 = vmatprep.subr.mxu0 0.0
  %v471 = vand.u32 %v27, 4294901760
  %472 = vmatpush1.msra.mxu0 %v471
  %473 = vmatprep.subr.mxu0 0.0
  %v474 = vand.u32 %v28, 4294901760
  %475 = vmatpush1.msra.mxu0 %v474
  %476 = vmatprep.subr.mxu0 0.0
  %v477 = vand.u32 %v29, 4294901760
  %478 = vmatpush1.msra.mxu0 %v477
  %479 = vmatprep.subr.mxu0 0.0
  %v480 = vand.u32 %v30, 4294901760
  %481 = vmatpush1.msra.mxu0 %v480
  %482 = vmatprep.subr.mxu0 0.0
  %v483 = vand.u32 %v31, 4294901760
  %484 = vmatpush1.msra.mxu0 %v483
  %485 = vmatprep.subr.mxu0 0.0
  %v486 = vand.u32 %v32, 4294901760
  %487 = vmatpush1.msra.mxu0 %v486
  %488 = vmatprep.subr.mxu0 0.0
  %v489 = vand.u32 %v33, 4294901760
  %490 = vmatpush1.msra.mxu0 %v489
  %491 = vmatprep.subr.mxu0 0.0
  %v492 = vand.u32 %v34, 4294901760
  %493 = vmatpush1.msra.mxu0 %v492
  %494 = vmatprep.subr.mxu0 0.0
  %v495 = vand.u32 %v35, 4294901760
  %496 = vmatpush1.msra.mxu0 %v495
  %497 = vmatprep.subr.mxu0 0.0
  %v498 = vand.u32 %v36, 4294901760
  %499 = vmatpush1.msra.mxu0 %v498
  %500 = vmatprep.subr.mxu0 0.0
  %501 = vmatpush1.msra.mxu0 0.0
  %502 = vmatprep.subr.mxu0 0.0
  %503 = vmatpush1.msra.mxu0 0.0
  %504 = vmatprep.subr.mxu0 0.0
  %505 = vmatpush1.msra.mxu0 0.0
  %506 = vmatprep.subr.mxu0 0.0
  %507 = vmatpush1.msra.mxu0 0.0
  %508 = vmatprep.subr.mxu0 0.0
  %509 = vmatpush1.msra.mxu0 0.0
  %510 = vmatprep.subr.mxu0 0.0
  %511 = vmatpush1.msra.mxu0 0.0
  %512 = vmatprep.subr.mxu0 0.0
  %513 = vmatpush1.msra.mxu0 0.0
  %514 = vmatprep.subr.mxu0 0.0
  %515 = vmatpush1.msra.mxu0 0.0
  %516 = vmatprep.subr.mxu0 0.0
  %517 = vmatpush1.msra.mxu0 0.0
  %518 = vmatprep.subr.mxu0 0.0
  %519 = vmatpush1.msra.mxu0 0.0
  %520 = vmatprep.subr.mxu0 0.0
  %521 = vmatpush1.msra.mxu0 0.0
  %522 = vmatprep.subr.mxu0 0.0
  %523 = vmatpush1.msra.mxu0 0.0
  %524 = vmatprep.subr.mxu0 0.0
  %525 = vmatpush1.msra.mxu0 0.0
  %526 = vmatprep.subr.mxu0 0.0
  %527 = vmatpush1.msra.mxu0 0.0
  %528 = vmatprep.subr.mxu0 0.0
  %529 = vmatpush1.msra.mxu0 0.0
  %530 = vmatprep.subr.mxu0 0.0
  %531 = vmatpush1.msra.mxu0 0.0
  %532 = vmatprep.mubr.f32.mxu0 0.0
  %v533 = vand.u32 %v17, 4294901760
  %v534 = vsub.f32 %v17, %v533
  %v535 = vand.u32 %v534, 4294901760
  %536 = vmatmul.mubr.f32.gmra.mrb[0].mxu0 %v535
  %v537 = vpop.f32.mrb[0].mxu0
  %v538 = vadd.f32 %v428, %v537
  %v539 = vpop.f32.mrb[0].mxu0
  %540 = vmatprep.mubr.f32.mxu0 0.0
  %v541 = vand.u32 %v18, 4294901760
  %v542 = vsub.f32 %v18, %v541
  %v543 = vand.u32 %v542, 4294901760
  %544 = vmatmul.mubr.f32.gmra.mrb[0].mxu0 %v543
  %v545 = vpop.f32.mrb[0].mxu0
  %v546 = vadd.f32 %v435, %v545
  %v547 = vpop.f32.mrb[0].mxu0
  %548 = vmatprep.mubr.f32.mxu0 0.0
  %v549 = vand.u32 %v19, 4294901760
  %v550 = vsub.f32 %v19, %v549
  %v551 = vand.u32 %v550, 4294901760
  %552 = vmatmul.mubr.f32.gmra.mrb[0].mxu0 %v551
  %v553 = vpop.f32.mrb[0].mxu0
  %v554 = vadd.f32 %v442, %v553
  %v555 = vpop.f32.mrb[0].mxu0
  %556 = vmatprep.mubr.f32.mxu0 0.0
  %v557 = vand.u32 %v20, 4294901760
  %v558 = vsub.f32 %v20, %v557
  %v559 = vand.u32 %v558, 4294901760
  %560 = vmatmul.mubr.f32.gmra.mrb[0].mxu0 %v559
  %v561 = vpop.f32.mrb[0].mxu0
  %v562 = vadd.f32 %v449, %v561
  %v563 = vpop.f32.mrb[0].mxu0
  %564 = vdwg.mxu0
  %565 = vmatprep.subr.mxu0 0.0
  %v566 = vand.u32 %v21, 4294901760
  %v567 = vsub.f32 %v21, %v566
  %v568 = vand.u32 %v567, 4294901760
  %569 = vmatpush1.msra.mxu0 %v568
  %570 = vmatprep.subr.mxu0 0.0
  %v571 = vand.u32 %v22, 4294901760
  %v572 = vsub.f32 %v22, %v571
  %v573 = vand.u32 %v572, 4294901760
  %574 = vmatpush1.msra.mxu0 %v573
  %575 = vmatprep.subr.mxu0 0.0
  %v576 = vand.u32 %v23, 4294901760
  %v577 = vsub.f32 %v23, %v576
  %v578 = vand.u32 %v577, 4294901760
  %579 = vmatpush1.msra.mxu0 %v578
  %580 = vmatprep.subr.mxu0 0.0
  %v581 = vand.u32 %v24, 4294901760
  %v582 = vsub.f32 %v24, %v581
  %v583 = vand.u32 %v582, 4294901760
  %584 = vmatpush1.msra.mxu0 %v583
  %585 = vmatprep.subr.mxu0 0.0
  %v586 = vand.u32 %v25, 4294901760
  %v587 = vsub.f32 %v25, %v586
  %v588 = vand.u32 %v587, 4294901760
  %589 = vmatpush1.msra.mxu0 %v588
  %590 = vmatprep.subr.mxu0 0.0
  %v591 = vand.u32 %v26, 4294901760
  %v592 = vsub.f32 %v26, %v591
  %v593 = vand.u32 %v592, 4294901760
  %594 = vmatpush1.msra.mxu0 %v593
  %595 = vmatprep.subr.mxu0 0.0
  %v596 = vand.u32 %v27, 4294901760
  %v597 = vsub.f32 %v27, %v596
  %v598 = vand.u32 %v597, 4294901760
  %599 = vmatpush1.msra.mxu0 %v598
  %600 = vmatprep.subr.mxu0 0.0
  %v601 = vand.u32 %v28, 4294901760
  %v602 = vsub.f32 %v28, %v601
  %v603 = vand.u32 %v602, 4294901760
  %604 = vmatpush1.msra.mxu0 %v603
  %605 = vmatprep.subr.mxu0 0.0
  %v606 = vand.u32 %v29, 4294901760
  %v607 = vsub.f32 %v29, %v606
  %v608 = vand.u32 %v607, 4294901760
  %609 = vmatpush1.msra.mxu0 %v608
  %610 = vmatprep.subr.mxu0 0.0
  %v611 = vand.u32 %v30, 4294901760
  %v612 = vsub.f32 %v30, %v611
  %v613 = vand.u32 %v612, 4294901760
  %614 = vmatpush1.msra.mxu0 %v613
  %615 = vmatprep.subr.mxu0 0.0
  %v616 = vand.u32 %v31, 4294901760
  %v617 = vsub.f32 %v31, %v616
  %v618 = vand.u32 %v617, 4294901760
  %619 = vmatpush1.msra.mxu0 %v618
  %620 = vmatprep.subr.mxu0 0.0
  %v621 = vand.u32 %v32, 4294901760
  %v622 = vsub.f32 %v32, %v621
  %v623 = vand.u32 %v622, 4294901760
  %624 = vmatpush1.msra.mxu0 %v623
  %625 = vmatprep.subr.mxu0 0.0
  %v626 = vand.u32 %v33, 4294901760
  %v627 = vsub.f32 %v33, %v626
  %v628 = vand.u32 %v627, 4294901760
  %629 = vmatpush1.msra.mxu0 %v628
  %630 = vmatprep.subr.mxu0 0.0
  %v631 = vand.u32 %v34, 4294901760
  %v632 = vsub.f32 %v34, %v631
  %v633 = vand.u32 %v632, 4294901760
  %634 = vmatpush1.msra.mxu0 %v633
  %635 = vmatprep.subr.mxu0 0.0
  %v636 = vand.u32 %v35, 4294901760
  %v637 = vsub.f32 %v35, %v636
  %v638 = vand.u32 %v637, 4294901760
  %639 = vmatpush1.msra.mxu0 %v638
  %640 = vmatprep.subr.mxu0 0.0
  %v641 = vand.u32 %v36, 4294901760
  %v642 = vsub.f32 %v36, %v641
  %v643 = vand.u32 %v642, 4294901760
  %644 = vmatpush1.msra.mxu0 %v643
  %645 = vmatprep.subr.mxu0 0.0
  %646 = vmatpush1.msra.mxu0 0.0
  %647 = vmatprep.subr.mxu0 0.0
  %648 = vmatpush1.msra.mxu0 0.0
  %649 = vmatprep.subr.mxu0 0.0
  %650 = vmatpush1.msra.mxu0 0.0
  %651 = vmatprep.subr.mxu0 0.0
  %652 = vmatpush1.msra.mxu0 0.0
  %653 = vmatprep.subr.mxu0 0.0
  %654 = vmatpush1.msra.mxu0 0.0
  %655 = vmatprep.subr.mxu0 0.0
  %656 = vmatpush1.msra.mxu0 0.0
  %657 = vmatprep.subr.mxu0 0.0
  %658 = vmatpush1.msra.mxu0 0.0
  %659 = vmatprep.subr.mxu0 0.0
  %660 = vmatpush1.msra.mxu0 0.0
  %661 = vmatprep.subr.mxu0 0.0
  %662 = vmatpush1.msra.mxu0 0.0
  %663 = vmatprep.subr.mxu0 0.0
  %664 = vmatpush1.msra.mxu0 0.0
  %665 = vmatprep.subr.mxu0 0.0
  %666 = vmatpush1.msra.mxu0 0.0
  %667 = vmatprep.subr.mxu0 0.0
  %668 = vmatpush1.msra.mxu0 0.0
  %669 = vmatprep.subr.mxu0 0.0
  %670 = vmatpush1.msra.mxu0 0.0
  %671 = vmatprep.subr.mxu0 0.0
  %672 = vmatpush1.msra.mxu0 0.0
  %673 = vmatprep.subr.mxu0 0.0
  %674 = vmatpush1.msra.mxu0 0.0
  %675 = vmatprep.subr.mxu0 0.0
  %676 = vmatpush1.msra.mxu0 0.0
  %677 = vmatprep.mubr.f32.mxu0 0.0
  %v678 = vand.u32 %v17, 4294901760
  %679 = vmatmul.mubr.f32.gmra.mrb[0].mxu0 %v678
  %v680 = vpop.f32.mrb[0].mxu0
  %v681 = vadd.f32 %v538, %v680
  %v682 = vpop.f32.mrb[0].mxu0
  %683 = vmatprep.mubr.f32.mxu0 0.0
  %v684 = vand.u32 %v18, 4294901760
  %685 = vmatmul.mubr.f32.gmra.mrb[0].mxu0 %v684
  %v686 = vpop.f32.mrb[0].mxu0
  %v687 = vadd.f32 %v546, %v686
  %v688 = vpop.f32.mrb[0].mxu0
  %689 = vmatprep.mubr.f32.mxu0 0.0
  %v690 = vand.u32 %v19, 4294901760
  %691 = vmatmul.mubr.f32.gmra.mrb[0].mxu0 %v690
  %v692 = vpop.f32.mrb[0].mxu0
  %v693 = vadd.f32 %v554, %v692
  %v694 = vpop.f32.mrb[0].mxu0
  %695 = vmatprep.mubr.f32.mxu0 0.0
  %v696 = vand.u32 %v20, 4294901760
  %697 = vmatmul.mubr.f32.gmra.mrb[0].mxu0 %v696
  %v698 = vpop.f32.mrb[0].mxu0
  %v699 = vadd.f32 %v562, %v698
  %v700 = vpop.f32.mrb[0].mxu0
  %701 = vdwg.mxu0
  %702 = vmatprep.subr.mxu0 0.0
  %v703 = vand.u32 %v21, 4294901760
  %704 = vmatpush1.msra.mxu0 %v703
  %705 = vmatprep.subr.mxu0 0.0
  %v706 = vand.u32 %v22, 4294901760
  %707 = vmatpush1.msra.mxu0 %v706
  %708 = vmatprep.subr.mxu0 0.0
  %v709 = vand.u32 %v23, 4294901760
  %710 = vmatpush1.msra.mxu0 %v709
  %711 = vmatprep.subr.mxu0 0.0
  %v712 = vand.u32 %v24, 4294901760
  %713 = vmatpush1.msra.mxu0 %v712
  %714 = vmatprep.subr.mxu0 0.0
  %v715 = vand.u32 %v25, 4294901760
  %716 = vmatpush1.msra.mxu0 %v715
  %717 = vmatprep.subr.mxu0 0.0
  %v718 = vand.u32 %v26, 4294901760
  %719 = vmatpush1.msra.mxu0 %v718
  %720 = vmatprep.subr.mxu0 0.0
  %v721 = vand.u32 %v27, 4294901760
  %722 = vmatpush1.msra.mxu0 %v721
  %723 = vmatprep.subr.mxu0 0.0
  %v724 = vand.u32 %v28, 4294901760
  %725 = vmatpush1.msra.mxu0 %v724
  %726 = vmatprep.subr.mxu0 0.0
  %v727 = vand.u32 %v29, 4294901760
  %728 = vmatpush1.msra.mxu0 %v727
  %729 = vmatprep.subr.mxu0 0.0
  %v730 = vand.u32 %v30, 4294901760
  %731 = vmatpush1.msra.mxu0 %v730
  %732 = vmatprep.subr.mxu0 0.0
  %v733 = vand.u32 %v31, 4294901760
  %734 = vmatpush1.msra.mxu0 %v733
  %735 = vmatprep.subr.mxu0 0.0
  %v736 = vand.u32 %v32, 4294901760
  %737 = vmatpush1.msra.mxu0 %v736
  %738 = vmatprep.subr.mxu0 0.0
  %v739 = vand.u32 %v33, 4294901760
  %740 = vmatpush1.msra.mxu0 %v739
  %741 = vmatprep.subr.mxu0 0.0
  %v742 = vand.u32 %v34, 4294901760
  %743 = vmatpush1.msra.mxu0 %v742
  %744 = vmatprep.subr.mxu0 0.0
  %v745 = vand.u32 %v35, 4294901760
  %746 = vmatpush1.msra.mxu0 %v745
  %747 = vmatprep.subr.mxu0 0.0
  %v748 = vand.u32 %v36, 4294901760
  %749 = vmatpush1.msra.mxu0 %v748
  %750 = vmatprep.subr.mxu0 0.0
  %751 = vmatpush1.msra.mxu0 0.0
  %752 = vmatprep.subr.mxu0 0.0
  %753 = vmatpush1.msra.mxu0 0.0
  %754 = vmatprep.subr.mxu0 0.0
  %755 = vmatpush1.msra.mxu0 0.0
  %756 = vmatprep.subr.mxu0 0.0
  %757 = vmatpush1.msra.mxu0 0.0
  %758 = vmatprep.subr.mxu0 0.0
  %759 = vmatpush1.msra.mxu0 0.0
  %760 = vmatprep.subr.mxu0 0.0
  %761 = vmatpush1.msra.mxu0 0.0
  %762 = vmatprep.subr.mxu0 0.0
  %763 = vmatpush1.msra.mxu0 0.0
  %764 = vmatprep.subr.mxu0 0.0
  %765 = vmatpush1.msra.mxu0 0.0
  %766 = vmatprep.subr.mxu0 0.0
  %767 = vmatpush1.msra.mxu0 0.0
  %768 = vmatprep.subr.mxu0 0.0
  %769 = vmatpush1.msra.mxu0 0.0
  %770 = vmatprep.subr.mxu0 0.0
  %771 = vmatpush1.msra.mxu0 0.0
  %772 = vmatprep.subr.mxu0 0.0
  %773 = vmatpush1.msra.mxu0 0.0
  %774 = vmatprep.subr.mxu0 0.0
  %775 = vmatpush1.msra.mxu0 0.0
  %776 = vmatprep.subr.mxu0 0.0
  %777 = vmatpush1.msra.mxu0 0.0
  %778 = vmatprep.subr.mxu0 0.0
  %779 = vmatpush1.msra.mxu0 0.0
  %780 = vmatprep.subr.mxu0 0.0
  %781 = vmatpush1.msra.mxu0 0.0
  %782 = vmatprep.mubr.f32.mxu0 0.0
  %v783 = vand.u32 %v17, 4294901760
  %784 = vmatmul.mubr.f32.gmra.mrb[0].mxu0 %v783
  %v785 = vpop.f32.mrb[0].mxu0
  %v786 = vadd.f32 %v681, %v785
  %v787 = vpop.f32.mrb[0].mxu0
  %788 = vmatprep.mubr.f32.mxu0 0.0
  %v789 = vand.u32 %v18, 4294901760
  %790 = vmatmul.mubr.f32.gmra.mrb[0].mxu0 %v789
  %v791 = vpop.f32.mrb[0].mxu0
  %v792 = vadd.f32 %v687, %v791
  %v793 = vpop.f32.mrb[0].mxu0
  %794 = vmatprep.mubr.f32.mxu0 0.0
  %v795 = vand.u32 %v19, 4294901760
  %796 = vmatmul.mubr.f32.gmra.mrb[0].mxu0 %v795
  %v797 = vpop.f32.mrb[0].mxu0
  %v798 = vadd.f32 %v693, %v797
  %v799 = vpop.f32.mrb[0].mxu0
  %800 = vmatprep.mubr.f32.mxu0 0.0
  %v801 = vand.u32 %v20, 4294901760
  %802 = vmatmul.mubr.f32.gmra.mrb[0].mxu0 %v801
  %v803 = vpop.f32.mrb[0].mxu0
  %v804 = vadd.f32 %v699, %v803
  %v805 = vpop.f32.mrb[0].mxu0
  %806 = vdwg.mxu0
  %v807 = vmul.f32 %v786, 0.03125
  %v808 = vmul.f32 %v792, 0.03125
  %v809 = vmul.f32 %v798, 0.03125
  %v810 = vmul.f32 %v804, 0.03125
  %v811 = vsub.f32 %v17, %v807
  %v812 = vsub.f32 %v18, %v808
  %v813 = vsub.f32 %v19, %v809
  %v814 = vsub.f32 %v20, %v810
  %v815 = vmul.f32 %v811, %v811
  %v816 = vmul.f32 %v812, %v812
  %v817 = vmul.f32 %v813, %v813
  %v818 = vmul.f32 %v814, %v814
  %819 = vmatprep.subr.mxu0 0.0
  %v820 = vand.u32 %v21, 4294901760
  %821 = vmatpush1.msra.mxu0 %v820
  %822 = vmatprep.subr.mxu0 0.0
  %v823 = vand.u32 %v22, 4294901760
  %824 = vmatpush1.msra.mxu0 %v823
  %825 = vmatprep.subr.mxu0 0.0
  %v826 = vand.u32 %v23, 4294901760
  %827 = vmatpush1.msra.mxu0 %v826
  %828 = vmatprep.subr.mxu0 0.0
  %v829 = vand.u32 %v24, 4294901760
  %830 = vmatpush1.msra.mxu0 %v829
  %831 = vmatprep.subr.mxu0 0.0
  %v832 = vand.u32 %v25, 4294901760
  %833 = vmatpush1.msra.mxu0 %v832
  %834 = vmatprep.subr.mxu0 0.0
  %v835 = vand.u32 %v26, 4294901760
  %836 = vmatpush1.msra.mxu0 %v835
  %837 = vmatprep.subr.mxu0 0.0
  %v838 = vand.u32 %v27, 4294901760
  %839 = vmatpush1.msra.mxu0 %v838
  %840 = vmatprep.subr.mxu0 0.0
  %v841 = vand.u32 %v28, 4294901760
  %842 = vmatpush1.msra.mxu0 %v841
  %843 = vmatprep.subr.mxu0 0.0
  %v844 = vand.u32 %v29, 4294901760
  %845 = vmatpush1.msra.mxu0 %v844
  %846 = vmatprep.subr.mxu0 0.0
  %v847 = vand.u32 %v30, 4294901760
  %848 = vmatpush1.msra.mxu0 %v847
  %849 = vmatprep.subr.mxu0 0.0
  %v850 = vand.u32 %v31, 4294901760
  %851 = vmatpush1.msra.mxu0 %v850
  %852 = vmatprep.subr.mxu0 0.0
  %v853 = vand.u32 %v32, 4294901760
  %854 = vmatpush1.msra.mxu0 %v853
  %855 = vmatprep.subr.mxu0 0.0
  %v856 = vand.u32 %v33, 4294901760
  %857 = vmatpush1.msra.mxu0 %v856
  %858 = vmatprep.subr.mxu0 0.0
  %v859 = vand.u32 %v34, 4294901760
  %860 = vmatpush1.msra.mxu0 %v859
  %861 = vmatprep.subr.mxu0 0.0
  %v862 = vand.u32 %v35, 4294901760
  %863 = vmatpush1.msra.mxu0 %v862
  %864 = vmatprep.subr.mxu0 0.0
  %v865 = vand.u32 %v36, 4294901760
  %866 = vmatpush1.msra.mxu0 %v865
  %867 = vmatprep.subr.mxu0 0.0
  %868 = vmatpush1.msra.mxu0 0.0
  %869 = vmatprep.subr.mxu0 0.0
  %870 = vmatpush1.msra.mxu0 0.0
  %871 = vmatprep.subr.mxu0 0.0
  %872 = vmatpush1.msra.mxu0 0.0
  %873 = vmatprep.subr.mxu0 0.0
  %874 = vmatpush1.msra.mxu0 0.0
  %875 = vmatprep.subr.mxu0 0.0
  %876 = vmatpush1.msra.mxu0 0.0
  %877 = vmatprep.subr.mxu0 0.0
  %878 = vmatpush1.msra.mxu0 0.0
  %879 = vmatprep.subr.mxu0 0.0
  %880 = vmatpush1.msra.mxu0 0.0
  %881 = vmatprep.subr.mxu0 0.0
  %882 = vmatpush1.msra.mxu0 0.0
  %883 = vmatprep.subr.mxu0 0.0
  %884 = vmatpush1.msra.mxu0 0.0
  %885 = vmatprep.subr.mxu0 0.0
  %886 = vmatpush1.msra.mxu0 0.0
  %887 = vmatprep.subr.mxu0 0.0
  %888 = vmatpush1.msra.mxu0 0.0
  %889 = vmatprep.subr.mxu0 0.0
  %890 = vmatpush1.msra.mxu0 0.0
  %891 = vmatprep.subr.mxu0 0.0
  %892 = vmatpush1.msra.mxu0 0.0
  %893 = vmatprep.subr.mxu0 0.0
  %894 = vmatpush1.msra.mxu0 0.0
  %895 = vmatprep.subr.mxu0 0.0
  %896 = vmatpush1.msra.mxu0 0.0
  %897 = vmatprep.subr.mxu0 0.0
  %898 = vmatpush1.msra.mxu0 0.0
  %899 = vmatprep.mubr.f32.mxu0 0.0
  %v900 = vand.u32 %v815, 4294901760
  %v901 = vsub.f32 %v815, %v900
  %v902 = vand.u32 %v901, 4294901760
  %v903 = vsub.f32 %v901, %v902
  %v904 = vand.u32 %v903, 4294901760
  %905 = vmatmul.mubr.f32.gmra.mrb[0].mxu0 %v904
  %v906 = vpop.f32.mrb[0].mxu0
  %v907 = vadd.f32 0.0, %v906
  %v908 = vpop.f32.mrb[0].mxu0
  %909 = vmatprep.mubr.f32.mxu0 0.0
  %v910 = vand.u32 %v816, 4294901760
  %v911 = vsub.f32 %v816, %v910
  %v912 = vand.u32 %v911, 4294901760
  %v913 = vsub.f32 %v911, %v912
  %v914 = vand.u32 %v913, 4294901760
  %915 = vmatmul.mubr.f32.gmra.mrb[0].mxu0 %v914
  %v916 = vpop.f32.mrb[0].mxu0
  %v917 = vadd.f32 0.0, %v916
  %v918 = vpop.f32.mrb[0].mxu0
  %919 = vmatprep.mubr.f32.mxu0 0.0
  %v920 = vand.u32 %v817, 4294901760
  %v921 = vsub.f32 %v817, %v920
  %v922 = vand.u32 %v921, 4294901760
  %v923 = vsub.f32 %v921, %v922
  %v924 = vand.u32 %v923, 4294901760
  %925 = vmatmul.mubr.f32.gmra.mrb[0].mxu0 %v924
  %v926 = vpop.f32.mrb[0].mxu0
  %v927 = vadd.f32 0.0, %v926
  %v928 = vpop.f32.mrb[0].mxu0
  %929 = vmatprep.mubr.f32.mxu0 0.0
  %v930 = vand.u32 %v818, 4294901760
  %v931 = vsub.f32 %v818, %v930
  %v932 = vand.u32 %v931, 4294901760
  %v933 = vsub.f32 %v931, %v932
  %v934 = vand.u32 %v933, 4294901760
  %935 = vmatmul.mubr.f32.gmra.mrb[0].mxu0 %v934
  %v936 = vpop.f32.mrb[0].mxu0
  %v937 = vadd.f32 0.0, %v936
  %v938 = vpop.f32.mrb[0].mxu0
  %939 = vdwg.mxu0
  %940 = vmatprep.subr.mxu0 0.0
  %v941 = vand.u32 %v21, 4294901760
  %v942 = vsub.f32 %v21, %v941
  %v943 = vand.u32 %v942, 4294901760
  %v944 = vsub.f32 %v942, %v943
  %v945 = vand.u32 %v944, 4294901760
  %946 = vmatpush1.msra.mxu0 %v945
  %947 = vmatprep.subr.mxu0 0.0
  %v948 = vand.u32 %v22, 4294901760
  %v949 = vsub.f32 %v22, %v948
  %v950 = vand.u32 %v949, 4294901760
  %v951 = vsub.f32 %v949, %v950
  %v952 = vand.u32 %v951, 4294901760
  %953 = vmatpush1.msra.mxu0 %v952
  %954 = vmatprep.subr.mxu0 0.0
  %v955 = vand.u32 %v23, 4294901760
  %v956 = vsub.f32 %v23, %v955
  %v957 = vand.u32 %v956, 4294901760
  %v958 = vsub.f32 %v956, %v957
  %v959 = vand.u32 %v958, 4294901760
  %960 = vmatpush1.msra.mxu0 %v959
  %961 = vmatprep.subr.mxu0 0.0
  %v962 = vand.u32 %v24, 4294901760
  %v963 = vsub.f32 %v24, %v962
  %v964 = vand.u32 %v963, 4294901760
  %v965 = vsub.f32 %v963, %v964
  %v966 = vand.u32 %v965, 4294901760
  %967 = vmatpush1.msra.mxu0 %v966
  %968 = vmatprep.subr.mxu0 0.0
  %v969 = vand.u32 %v25, 4294901760
  %v970 = vsub.f32 %v25, %v969
  %v971 = vand.u32 %v970, 4294901760
  %v972 = vsub.f32 %v970, %v971
  %v973 = vand.u32 %v972, 4294901760
  %974 = vmatpush1.msra.mxu0 %v973
  %975 = vmatprep.subr.mxu0 0.0
  %v976 = vand.u32 %v26, 4294901760
  %v977 = vsub.f32 %v26, %v976
  %v978 = vand.u32 %v977, 4294901760
  %v979 = vsub.f32 %v977, %v978
  %v980 = vand.u32 %v979, 4294901760
  %981 = vmatpush1.msra.mxu0 %v980
  %982 = vmatprep.subr.mxu0 0.0
  %v983 = vand.u32 %v27, 4294901760
  %v984 = vsub.f32 %v27, %v983
  %v985 = vand.u32 %v984, 4294901760
  %v986 = vsub.f32 %v984, %v985
  %v987 = vand.u32 %v986, 4294901760
  %988 = vmatpush1.msra.mxu0 %v987
  %989 = vmatprep.subr.mxu0 0.0
  %v990 = vand.u32 %v28, 4294901760
  %v991 = vsub.f32 %v28, %v990
  %v992 = vand.u32 %v991, 4294901760
  %v993 = vsub.f32 %v991, %v992
  %v994 = vand.u32 %v993, 4294901760
  %995 = vmatpush1.msra.mxu0 %v994
  %996 = vmatprep.subr.mxu0 0.0
  %v997 = vand.u32 %v29, 4294901760
  %v998 = vsub.f32 %v29, %v997
  %v999 = vand.u32 %v998, 4294901760
  %v1000 = vsub.f32 %v998, %v999
  %v1001 = vand.u32 %v1000, 4294901760
  %1002 = vmatpush1.msra.mxu0 %v1001
  %1003 = vmatprep.subr.mxu0 0.0
  %v1004 = vand.u32 %v30, 4294901760
  %v1005 = vsub.f32 %v30, %v1004
  %v1006 = vand.u32 %v1005, 4294901760
  %v1007 = vsub.f32 %v1005, %v1006
  %v1008 = vand.u32 %v1007, 4294901760
  %1009 = vmatpush1.msra.mxu0 %v1008
  %1010 = vmatprep.subr.mxu0 0.0
  %v1011 = vand.u32 %v31, 4294901760
  %v1012 = vsub.f32 %v31, %v1011
  %v1013 = vand.u32 %v1012, 4294901760
  %v1014 = vsub.f32 %v1012, %v1013
  %v1015 = vand.u32 %v1014, 4294901760
  %1016 = vmatpush1.msra.mxu0 %v1015
  %1017 = vmatprep.subr.mxu0 0.0
  %v1018 = vand.u32 %v32, 4294901760
  %v1019 = vsub.f32 %v32, %v1018
  %v1020 = vand.u32 %v1019, 4294901760
  %v1021 = vsub.f32 %v1019, %v1020
  %v1022 = vand.u32 %v1021, 4294901760
  %1023 = vmatpush1.msra.mxu0 %v1022
  %1024 = vmatprep.subr.mxu0 0.0
  %v1025 = vand.u32 %v33, 4294901760
  %v1026 = vsub.f32 %v33, %v1025
  %v1027 = vand.u32 %v1026, 4294901760
  %v1028 = vsub.f32 %v1026, %v1027
  %v1029 = vand.u32 %v1028, 4294901760
  %1030 = vmatpush1.msra.mxu0 %v1029
  %1031 = vmatprep.subr.mxu0 0.0
  %v1032 = vand.u32 %v34, 4294901760
  %v1033 = vsub.f32 %v34, %v1032
  %v1034 = vand.u32 %v1033, 4294901760
  %v1035 = vsub.f32 %v1033, %v1034
  %v1036 = vand.u32 %v1035, 4294901760
  %1037 = vmatpush1.msra.mxu0 %v1036
  %1038 = vmatprep.subr.mxu0 0.0
  %v1039 = vand.u32 %v35, 4294901760
  %v1040 = vsub.f32 %v35, %v1039
  %v1041 = vand.u32 %v1040, 4294901760
  %v1042 = vsub.f32 %v1040, %v1041
  %v1043 = vand.u32 %v1042, 4294901760
  %1044 = vmatpush1.msra.mxu0 %v1043
  %1045 = vmatprep.subr.mxu0 0.0
  %v1046 = vand.u32 %v36, 4294901760
  %v1047 = vsub.f32 %v36, %v1046
  %v1048 = vand.u32 %v1047, 4294901760
  %v1049 = vsub.f32 %v1047, %v1048
  %v1050 = vand.u32 %v1049, 4294901760
  %1051 = vmatpush1.msra.mxu0 %v1050
  %1052 = vmatprep.subr.mxu0 0.0
  %1053 = vmatpush1.msra.mxu0 0.0
  %1054 = vmatprep.subr.mxu0 0.0
  %1055 = vmatpush1.msra.mxu0 0.0
  %1056 = vmatprep.subr.mxu0 0.0
  %1057 = vmatpush1.msra.mxu0 0.0
  %1058 = vmatprep.subr.mxu0 0.0
  %1059 = vmatpush1.msra.mxu0 0.0
  %1060 = vmatprep.subr.mxu0 0.0
  %1061 = vmatpush1.msra.mxu0 0.0
  %1062 = vmatprep.subr.mxu0 0.0
  %1063 = vmatpush1.msra.mxu0 0.0
  %1064 = vmatprep.subr.mxu0 0.0
  %1065 = vmatpush1.msra.mxu0 0.0
  %1066 = vmatprep.subr.mxu0 0.0
  %1067 = vmatpush1.msra.mxu0 0.0
  %1068 = vmatprep.subr.mxu0 0.0
  %1069 = vmatpush1.msra.mxu0 0.0
  %1070 = vmatprep.subr.mxu0 0.0
  %1071 = vmatpush1.msra.mxu0 0.0
  %1072 = vmatprep.subr.mxu0 0.0
  %1073 = vmatpush1.msra.mxu0 0.0
  %1074 = vmatprep.subr.mxu0 0.0
  %1075 = vmatpush1.msra.mxu0 0.0
  %1076 = vmatprep.subr.mxu0 0.0
  %1077 = vmatpush1.msra.mxu0 0.0
  %1078 = vmatprep.subr.mxu0 0.0
  %1079 = vmatpush1.msra.mxu0 0.0
  %1080 = vmatprep.subr.mxu0 0.0
  %1081 = vmatpush1.msra.mxu0 0.0
  %1082 = vmatprep.subr.mxu0 0.0
  %1083 = vmatpush1.msra.mxu0 0.0
  %1084 = vmatprep.mubr.f32.mxu0 0.0
  %v1085 = vand.u32 %v815, 4294901760
  %1086 = vmatmul.mubr.f32.gmra.mrb[0].mxu0 %v1085
  %v1087 = vpop.f32.mrb[0].mxu0
  %v1088 = vadd.f32 %v907, %v1087
  %v1089 = vpop.f32.mrb[0].mxu0
  %1090 = vmatprep.mubr.f32.mxu0 0.0
  %v1091 = vand.u32 %v816, 4294901760
  %1092 = vmatmul.mubr.f32.gmra.mrb[0].mxu0 %v1091
  %v1093 = vpop.f32.mrb[0].mxu0
  %v1094 = vadd.f32 %v917, %v1093
  %v1095 = vpop.f32.mrb[0].mxu0
  %1096 = vmatprep.mubr.f32.mxu0 0.0
  %v1097 = vand.u32 %v817, 4294901760
  %1098 = vmatmul.mubr.f32.gmra.mrb[0].mxu0 %v1097
  %v1099 = vpop.f32.mrb[0].mxu0
  %v1100 = vadd.f32 %v927, %v1099
  %v1101 = vpop.f32.mrb[0].mxu0
  %1102 = vmatprep.mubr.f32.mxu0 0.0
  %v1103 = vand.u32 %v818, 4294901760
  %1104 = vmatmul.mubr.f32.gmra.mrb[0].mxu0 %v1103
  %v1105 = vpop.f32.mrb[0].mxu0
  %v1106 = vadd.f32 %v937, %v1105
  %v1107 = vpop.f32.mrb[0].mxu0
  %1108 = vdwg.mxu0
  %1109 = vmatprep.subr.mxu0 0.0
  %v1110 = vand.u32 %v21, 4294901760
  %v1111 = vsub.f32 %v21, %v1110
  %1112 = vmatpush1.msra.mxu0 %v1111
  %1113 = vmatprep.subr.mxu0 0.0
  %v1114 = vand.u32 %v22, 4294901760
  %v1115 = vsub.f32 %v22, %v1114
  %1116 = vmatpush1.msra.mxu0 %v1115
  %1117 = vmatprep.subr.mxu0 0.0
  %v1118 = vand.u32 %v23, 4294901760
  %v1119 = vsub.f32 %v23, %v1118
  %1120 = vmatpush1.msra.mxu0 %v1119
  %1121 = vmatprep.subr.mxu0 0.0
  %v1122 = vand.u32 %v24, 4294901760
  %v1123 = vsub.f32 %v24, %v1122
  %1124 = vmatpush1.msra.mxu0 %v1123
  %1125 = vmatprep.subr.mxu0 0.0
  %v1126 = vand.u32 %v25, 4294901760
  %v1127 = vsub.f32 %v25, %v1126
  %1128 = vmatpush1.msra.mxu0 %v1127
  %1129 = vmatprep.subr.mxu0 0.0
  %v1130 = vand.u32 %v26, 4294901760
  %v1131 = vsub.f32 %v26, %v1130
  %1132 = vmatpush1.msra.mxu0 %v1131
  %1133 = vmatprep.subr.mxu0 0.0
  %v1134 = vand.u32 %v27, 4294901760
  %v1135 = vsub.f32 %v27, %v1134
  %1136 = vmatpush1.msra.mxu0 %v1135
  %1137 = vmatprep.subr.mxu0 0.0
  %v1138 = vand.u32 %v28, 4294901760
  %v1139 = vsub.f32 %v28, %v1138
  %1140 = vmatpush1.msra.mxu0 %v1139
  %1141 = vmatprep.subr.mxu0 0.0
  %v1142 = vand.u32 %v29, 4294901760
  %v1143 = vsub.f32 %v29, %v1142
  %1144 = vmatpush1.msra.mxu0 %v1143
  %1145 = vmatprep.subr.mxu0 0.0
  %v1146 = vand.u32 %v30, 4294901760
  %v1147 = vsub.f32 %v30, %v1146
  %1148 = vmatpush1.msra.mxu0 %v1147
  %1149 = vmatprep.subr.mxu0 0.0
  %v1150 = vand.u32 %v31, 4294901760
  %v1151 = vsub.f32 %v31, %v1150
  %1152 = vmatpush1.msra.mxu0 %v1151
  %1153 = vmatprep.subr.mxu0 0.0
  %v1154 = vand.u32 %v32, 4294901760
  %v1155 = vsub.f32 %v32, %v1154
  %1156 = vmatpush1.msra.mxu0 %v1155
  %1157 = vmatprep.subr.mxu0 0.0
  %v1158 = vand.u32 %v33, 4294901760
  %v1159 = vsub.f32 %v33, %v1158
  %1160 = vmatpush1.msra.mxu0 %v1159
  %1161 = vmatprep.subr.mxu0 0.0
  %v1162 = vand.u32 %v34, 4294901760
  %v1163 = vsub.f32 %v34, %v1162
  %1164 = vmatpush1.msra.mxu0 %v1163
  %1165 = vmatprep.subr.mxu0 0.0
  %v1166 = vand.u32 %v35, 4294901760
  %v1167 = vsub.f32 %v35, %v1166
  %1168 = vmatpush1.msra.mxu0 %v1167
  %1169 = vmatprep.subr.mxu0 0.0
  %v1170 = vand.u32 %v36, 4294901760
  %v1171 = vsub.f32 %v36, %v1170
  %1172 = vmatpush1.msra.mxu0 %v1171
  %1173 = vmatprep.subr.mxu0 0.0
  %1174 = vmatpush1.msra.mxu0 0.0
  %1175 = vmatprep.subr.mxu0 0.0
  %1176 = vmatpush1.msra.mxu0 0.0
  %1177 = vmatprep.subr.mxu0 0.0
  %1178 = vmatpush1.msra.mxu0 0.0
  %1179 = vmatprep.subr.mxu0 0.0
  %1180 = vmatpush1.msra.mxu0 0.0
  %1181 = vmatprep.subr.mxu0 0.0
  %1182 = vmatpush1.msra.mxu0 0.0
  %1183 = vmatprep.subr.mxu0 0.0
  %1184 = vmatpush1.msra.mxu0 0.0
  %1185 = vmatprep.subr.mxu0 0.0
  %1186 = vmatpush1.msra.mxu0 0.0
  %1187 = vmatprep.subr.mxu0 0.0
  %1188 = vmatpush1.msra.mxu0 0.0
  %1189 = vmatprep.subr.mxu0 0.0
  %1190 = vmatpush1.msra.mxu0 0.0
  %1191 = vmatprep.subr.mxu0 0.0
  %1192 = vmatpush1.msra.mxu0 0.0
  %1193 = vmatprep.subr.mxu0 0.0
  %1194 = vmatpush1.msra.mxu0 0.0
  %1195 = vmatprep.subr.mxu0 0.0
  %1196 = vmatpush1.msra.mxu0 0.0
  %1197 = vmatprep.subr.mxu0 0.0
  %1198 = vmatpush1.msra.mxu0 0.0
  %1199 = vmatprep.subr.mxu0 0.0
  %1200 = vmatpush1.msra.mxu0 0.0
  %1201 = vmatprep.subr.mxu0 0.0
  %1202 = vmatpush1.msra.mxu0 0.0
  %1203 = vmatprep.subr.mxu0 0.0
  %1204 = vmatpush1.msra.mxu0 0.0
  %1205 = vmatprep.mubr.f32.mxu0 0.0
  %v1206 = vand.u32 %v815, 4294901760
  %v1207 = vsub.f32 %v815, %v1206
  %1208 = vmatmul.mubr.f32.gmra.mrb[0].mxu0 %v1207
  %v1209 = vpop.f32.mrb[0].mxu0
  %v1210 = vadd.f32 %v1088, %v1209
  %v1211 = vpop.f32.mrb[0].mxu0
  %1212 = vmatprep.mubr.f32.mxu0 0.0
  %v1213 = vand.u32 %v816, 4294901760
  %v1214 = vsub.f32 %v816, %v1213
  %1215 = vmatmul.mubr.f32.gmra.mrb[0].mxu0 %v1214
  %v1216 = vpop.f32.mrb[0].mxu0
  %v1217 = vadd.f32 %v1094, %v1216
  %v1218 = vpop.f32.mrb[0].mxu0
  %1219 = vmatprep.mubr.f32.mxu0 0.0
  %v1220 = vand.u32 %v817, 4294901760
  %v1221 = vsub.f32 %v817, %v1220
  %1222 = vmatmul.mubr.f32.gmra.mrb[0].mxu0 %v1221
  %v1223 = vpop.f32.mrb[0].mxu0
  %v1224 = vadd.f32 %v1100, %v1223
  %v1225 = vpop.f32.mrb[0].mxu0
  %1226 = vmatprep.mubr.f32.mxu0 0.0
  %v1227 = vand.u32 %v818, 4294901760
  %v1228 = vsub.f32 %v818, %v1227
  %1229 = vmatmul.mubr.f32.gmra.mrb[0].mxu0 %v1228
  %v1230 = vpop.f32.mrb[0].mxu0
  %v1231 = vadd.f32 %v1106, %v1230
  %v1232 = vpop.f32.mrb[0].mxu0
  %1233 = vdwg.mxu0
  %1234 = vmatprep.subr.mxu0 0.0
  %v1235 = vand.u32 %v21, 4294901760
  %1236 = vmatpush1.msra.mxu0 %v1235
  %1237 = vmatprep.subr.mxu0 0.0
  %v1238 = vand.u32 %v22, 4294901760
  %1239 = vmatpush1.msra.mxu0 %v1238
  %1240 = vmatprep.subr.mxu0 0.0
  %v1241 = vand.u32 %v23, 4294901760
  %1242 = vmatpush1.msra.mxu0 %v1241
  %1243 = vmatprep.subr.mxu0 0.0
  %v1244 = vand.u32 %v24, 4294901760
  %1245 = vmatpush1.msra.mxu0 %v1244
  %1246 = vmatprep.subr.mxu0 0.0
  %v1247 = vand.u32 %v25, 4294901760
  %1248 = vmatpush1.msra.mxu0 %v1247
  %1249 = vmatprep.subr.mxu0 0.0
  %v1250 = vand.u32 %v26, 4294901760
  %1251 = vmatpush1.msra.mxu0 %v1250
  %1252 = vmatprep.subr.mxu0 0.0
  %v1253 = vand.u32 %v27, 4294901760
  %1254 = vmatpush1.msra.mxu0 %v1253
  %1255 = vmatprep.subr.mxu0 0.0
  %v1256 = vand.u32 %v28, 4294901760
  %1257 = vmatpush1.msra.mxu0 %v1256
  %1258 = vmatprep.subr.mxu0 0.0
  %v1259 = vand.u32 %v29, 4294901760
  %1260 = vmatpush1.msra.mxu0 %v1259
  %1261 = vmatprep.subr.mxu0 0.0
  %v1262 = vand.u32 %v30, 4294901760
  %1263 = vmatpush1.msra.mxu0 %v1262
  %1264 = vmatprep.subr.mxu0 0.0
  %v1265 = vand.u32 %v31, 4294901760
  %1266 = vmatpush1.msra.mxu0 %v1265
  %1267 = vmatprep.subr.mxu0 0.0
  %v1268 = vand.u32 %v32, 4294901760
  %1269 = vmatpush1.msra.mxu0 %v1268
  %1270 = vmatprep.subr.mxu0 0.0
  %v1271 = vand.u32 %v33, 4294901760
  %1272 = vmatpush1.msra.mxu0 %v1271
  %1273 = vmatprep.subr.mxu0 0.0
  %v1274 = vand.u32 %v34, 4294901760
  %1275 = vmatpush1.msra.mxu0 %v1274
  %1276 = vmatprep.subr.mxu0 0.0
  %v1277 = vand.u32 %v35, 4294901760
  %1278 = vmatpush1.msra.mxu0 %v1277
  %1279 = vmatprep.subr.mxu0 0.0
  %v1280 = vand.u32 %v36, 4294901760
  %1281 = vmatpush1.msra.mxu0 %v1280
  %1282 = vmatprep.subr.mxu0 0.0
  %1283 = vmatpush1.msra.mxu0 0.0
  %1284 = vmatprep.subr.mxu0 0.0
  %1285 = vmatpush1.msra.mxu0 0.0
  %1286 = vmatprep.subr.mxu0 0.0
  %1287 = vmatpush1.msra.mxu0 0.0
  %1288 = vmatprep.subr.mxu0 0.0
  %1289 = vmatpush1.msra.mxu0 0.0
  %1290 = vmatprep.subr.mxu0 0.0
  %1291 = vmatpush1.msra.mxu0 0.0
  %1292 = vmatprep.subr.mxu0 0.0
  %1293 = vmatpush1.msra.mxu0 0.0
  %1294 = vmatprep.subr.mxu0 0.0
  %1295 = vmatpush1.msra.mxu0 0.0
  %1296 = vmatprep.subr.mxu0 0.0
  %1297 = vmatpush1.msra.mxu0 0.0
  %1298 = vmatprep.subr.mxu0 0.0
  %1299 = vmatpush1.msra.mxu0 0.0
  %1300 = vmatprep.subr.mxu0 0.0
  %1301 = vmatpush1.msra.mxu0 0.0
  %1302 = vmatprep.subr.mxu0 0.0
  %1303 = vmatpush1.msra.mxu0 0.0
  %1304 = vmatprep.subr.mxu0 0.0
  %1305 = vmatpush1.msra.mxu0 0.0
  %1306 = vmatprep.subr.mxu0 0.0
  %1307 = vmatpush1.msra.mxu0 0.0
  %1308 = vmatprep.subr.mxu0 0.0
  %1309 = vmatpush1.msra.mxu0 0.0
  %1310 = vmatprep.subr.mxu0 0.0
  %1311 = vmatpush1.msra.mxu0 0.0
  %1312 = vmatprep.subr.mxu0 0.0
  %1313 = vmatpush1.msra.mxu0 0.0
  %1314 = vmatprep.mubr.f32.mxu0 0.0
  %v1315 = vand.u32 %v815, 4294901760
  %v1316 = vsub.f32 %v815, %v1315
  %v1317 = vand.u32 %v1316, 4294901760
  %1318 = vmatmul.mubr.f32.gmra.mrb[0].mxu0 %v1317
  %v1319 = vpop.f32.mrb[0].mxu0
  %v1320 = vadd.f32 %v1210, %v1319
  %v1321 = vpop.f32.mrb[0].mxu0
  %1322 = vmatprep.mubr.f32.mxu0 0.0
  %v1323 = vand.u32 %v816, 4294901760
  %v1324 = vsub.f32 %v816, %v1323
  %v1325 = vand.u32 %v1324, 4294901760
  %1326 = vmatmul.mubr.f32.gmra.mrb[0].mxu0 %v1325
  %v1327 = vpop.f32.mrb[0].mxu0
  %v1328 = vadd.f32 %v1217, %v1327
  %v1329 = vpop.f32.mrb[0].mxu0
  %1330 = vmatprep.mubr.f32.mxu0 0.0
  %v1331 = vand.u32 %v817, 4294901760
  %v1332 = vsub.f32 %v817, %v1331
  %v1333 = vand.u32 %v1332, 4294901760
  %1334 = vmatmul.mubr.f32.gmra.mrb[0].mxu0 %v1333
  %v1335 = vpop.f32.mrb[0].mxu0
  %v1336 = vadd.f32 %v1224, %v1335
  %v1337 = vpop.f32.mrb[0].mxu0
  %1338 = vmatprep.mubr.f32.mxu0 0.0
  %v1339 = vand.u32 %v818, 4294901760
  %v1340 = vsub.f32 %v818, %v1339
  %v1341 = vand.u32 %v1340, 4294901760
  %1342 = vmatmul.mubr.f32.gmra.mrb[0].mxu0 %v1341
  %v1343 = vpop.f32.mrb[0].mxu0
  %v1344 = vadd.f32 %v1231, %v1343
  %v1345 = vpop.f32.mrb[0].mxu0
  %1346 = vdwg.mxu0
  %1347 = vmatprep.subr.mxu0 0.0
  %v1348 = vand.u32 %v21, 4294901760
  %v1349 = vsub.f32 %v21, %v1348
  %v1350 = vand.u32 %v1349, 4294901760
  %1351 = vmatpush1.msra.mxu0 %v1350
  %1352 = vmatprep.subr.mxu0 0.0
  %v1353 = vand.u32 %v22, 4294901760
  %v1354 = vsub.f32 %v22, %v1353
  %v1355 = vand.u32 %v1354, 4294901760
  %1356 = vmatpush1.msra.mxu0 %v1355
  %1357 = vmatprep.subr.mxu0 0.0
  %v1358 = vand.u32 %v23, 4294901760
  %v1359 = vsub.f32 %v23, %v1358
  %v1360 = vand.u32 %v1359, 4294901760
  %1361 = vmatpush1.msra.mxu0 %v1360
  %1362 = vmatprep.subr.mxu0 0.0
  %v1363 = vand.u32 %v24, 4294901760
  %v1364 = vsub.f32 %v24, %v1363
  %v1365 = vand.u32 %v1364, 4294901760
  %1366 = vmatpush1.msra.mxu0 %v1365
  %1367 = vmatprep.subr.mxu0 0.0
  %v1368 = vand.u32 %v25, 4294901760
  %v1369 = vsub.f32 %v25, %v1368
  %v1370 = vand.u32 %v1369, 4294901760
  %1371 = vmatpush1.msra.mxu0 %v1370
  %1372 = vmatprep.subr.mxu0 0.0
  %v1373 = vand.u32 %v26, 4294901760
  %v1374 = vsub.f32 %v26, %v1373
  %v1375 = vand.u32 %v1374, 4294901760
  %1376 = vmatpush1.msra.mxu0 %v1375
  %1377 = vmatprep.subr.mxu0 0.0
  %v1378 = vand.u32 %v27, 4294901760
  %v1379 = vsub.f32 %v27, %v1378
  %v1380 = vand.u32 %v1379, 4294901760
  %1381 = vmatpush1.msra.mxu0 %v1380
  %1382 = vmatprep.subr.mxu0 0.0
  %v1383 = vand.u32 %v28, 4294901760
  %v1384 = vsub.f32 %v28, %v1383
  %v1385 = vand.u32 %v1384, 4294901760
  %1386 = vmatpush1.msra.mxu0 %v1385
  %1387 = vmatprep.subr.mxu0 0.0
  %v1388 = vand.u32 %v29, 4294901760
  %v1389 = vsub.f32 %v29, %v1388
  %v1390 = vand.u32 %v1389, 4294901760
  %1391 = vmatpush1.msra.mxu0 %v1390
  %1392 = vmatprep.subr.mxu0 0.0
  %v1393 = vand.u32 %v30, 4294901760
  %v1394 = vsub.f32 %v30, %v1393
  %v1395 = vand.u32 %v1394, 4294901760
  %1396 = vmatpush1.msra.mxu0 %v1395
  %1397 = vmatprep.subr.mxu0 0.0
  %v1398 = vand.u32 %v31, 4294901760
  %v1399 = vsub.f32 %v31, %v1398
  %v1400 = vand.u32 %v1399, 4294901760
  %1401 = vmatpush1.msra.mxu0 %v1400
  %1402 = vmatprep.subr.mxu0 0.0
  %v1403 = vand.u32 %v32, 4294901760
  %v1404 = vsub.f32 %v32, %v1403
  %v1405 = vand.u32 %v1404, 4294901760
  %1406 = vmatpush1.msra.mxu0 %v1405
  %1407 = vmatprep.subr.mxu0 0.0
  %v1408 = vand.u32 %v33, 4294901760
  %v1409 = vsub.f32 %v33, %v1408
  %v1410 = vand.u32 %v1409, 4294901760
  %1411 = vmatpush1.msra.mxu0 %v1410
  %1412 = vmatprep.subr.mxu0 0.0
  %v1413 = vand.u32 %v34, 4294901760
  %v1414 = vsub.f32 %v34, %v1413
  %v1415 = vand.u32 %v1414, 4294901760
  %1416 = vmatpush1.msra.mxu0 %v1415
  %1417 = vmatprep.subr.mxu0 0.0
  %v1418 = vand.u32 %v35, 4294901760
  %v1419 = vsub.f32 %v35, %v1418
  %v1420 = vand.u32 %v1419, 4294901760
  %1421 = vmatpush1.msra.mxu0 %v1420
  %1422 = vmatprep.subr.mxu0 0.0
  %v1423 = vand.u32 %v36, 4294901760
  %v1424 = vsub.f32 %v36, %v1423
  %v1425 = vand.u32 %v1424, 4294901760
  %1426 = vmatpush1.msra.mxu0 %v1425
  %1427 = vmatprep.subr.mxu0 0.0
  %1428 = vmatpush1.msra.mxu0 0.0
  %1429 = vmatprep.subr.mxu0 0.0
  %1430 = vmatpush1.msra.mxu0 0.0
  %1431 = vmatprep.subr.mxu0 0.0
  %1432 = vmatpush1.msra.mxu0 0.0
  %1433 = vmatprep.subr.mxu0 0.0
  %1434 = vmatpush1.msra.mxu0 0.0
  %1435 = vmatprep.subr.mxu0 0.0
  %1436 = vmatpush1.msra.mxu0 0.0
  %1437 = vmatprep.subr.mxu0 0.0
  %1438 = vmatpush1.msra.mxu0 0.0
  %1439 = vmatprep.subr.mxu0 0.0
  %1440 = vmatpush1.msra.mxu0 0.0
  %1441 = vmatprep.subr.mxu0 0.0
  %1442 = vmatpush1.msra.mxu0 0.0
  %1443 = vmatprep.subr.mxu0 0.0
  %1444 = vmatpush1.msra.mxu0 0.0
  %1445 = vmatprep.subr.mxu0 0.0
  %1446 = vmatpush1.msra.mxu0 0.0
  %1447 = vmatprep.subr.mxu0 0.0
  %1448 = vmatpush1.msra.mxu0 0.0
  %1449 = vmatprep.subr.mxu0 0.0
  %1450 = vmatpush1.msra.mxu0 0.0
  %1451 = vmatprep.subr.mxu0 0.0
  %1452 = vmatpush1.msra.mxu0 0.0
  %1453 = vmatprep.subr.mxu0 0.0
  %1454 = vmatpush1.msra.mxu0 0.0
  %1455 = vmatprep.subr.mxu0 0.0
  %1456 = vmatpush1.msra.mxu0 0.0
  %1457 = vmatprep.subr.mxu0 0.0
  %1458 = vmatpush1.msra.mxu0 0.0
  %1459 = vmatprep.mubr.f32.mxu0 0.0
  %v1460 = vand.u32 %v815, 4294901760
  %1461 = vmatmul.mubr.f32.gmra.mrb[0].mxu0 %v1460
  %v1462 = vpop.f32.mrb[0].mxu0
  %v1463 = vadd.f32 %v1320, %v1462
  %v1464 = vpop.f32.mrb[0].mxu0
  %1465 = vmatprep.mubr.f32.mxu0 0.0
  %v1466 = vand.u32 %v816, 4294901760
  %1467 = vmatmul.mubr.f32.gmra.mrb[0].mxu0 %v1466
  %v1468 = vpop.f32.mrb[0].mxu0
  %v1469 = vadd.f32 %v1328, %v1468
  %v1470 = vpop.f32.mrb[0].mxu0
  %1471 = vmatprep.mubr.f32.mxu0 0.0
  %v1472 = vand.u32 %v817, 4294901760
  %1473 = vmatmul.mubr.f32.gmra.mrb[0].mxu0 %v1472
  %v1474 = vpop.f32.mrb[0].mxu0
  %v1475 = vadd.f32 %v1336, %v1474
  %v1476 = vpop.f32.mrb[0].mxu0
  %1477 = vmatprep.mubr.f32.mxu0 0.0
  %v1478 = vand.u32 %v818, 4294901760
  %1479 = vmatmul.mubr.f32.gmra.mrb[0].mxu0 %v1478
  %v1480 = vpop.f32.mrb[0].mxu0
  %v1481 = vadd.f32 %v1344, %v1480
  %v1482 = vpop.f32.mrb[0].mxu0
  %1483 = vdwg.mxu0
  %1484 = vmatprep.subr.mxu0 0.0
  %v1485 = vand.u32 %v21, 4294901760
  %1486 = vmatpush1.msra.mxu0 %v1485
  %1487 = vmatprep.subr.mxu0 0.0
  %v1488 = vand.u32 %v22, 4294901760
  %1489 = vmatpush1.msra.mxu0 %v1488
  %1490 = vmatprep.subr.mxu0 0.0
  %v1491 = vand.u32 %v23, 4294901760
  %1492 = vmatpush1.msra.mxu0 %v1491
  %1493 = vmatprep.subr.mxu0 0.0
  %v1494 = vand.u32 %v24, 4294901760
  %1495 = vmatpush1.msra.mxu0 %v1494
  %1496 = vmatprep.subr.mxu0 0.0
  %v1497 = vand.u32 %v25, 4294901760
  %1498 = vmatpush1.msra.mxu0 %v1497
  %1499 = vmatprep.subr.mxu0 0.0
  %v1500 = vand.u32 %v26, 4294901760
  %1501 = vmatpush1.msra.mxu0 %v1500
  %1502 = vmatprep.subr.mxu0 0.0
  %v1503 = vand.u32 %v27, 4294901760
  %1504 = vmatpush1.msra.mxu0 %v1503
  %1505 = vmatprep.subr.mxu0 0.0
  %v1506 = vand.u32 %v28, 4294901760
  %1507 = vmatpush1.msra.mxu0 %v1506
  %1508 = vmatprep.subr.mxu0 0.0
  %v1509 = vand.u32 %v29, 4294901760
  %1510 = vmatpush1.msra.mxu0 %v1509
  %1511 = vmatprep.subr.mxu0 0.0
  %v1512 = vand.u32 %v30, 4294901760
  %1513 = vmatpush1.msra.mxu0 %v1512
  %1514 = vmatprep.subr.mxu0 0.0
  %v1515 = vand.u32 %v31, 4294901760
  %1516 = vmatpush1.msra.mxu0 %v1515
  %1517 = vmatprep.subr.mxu0 0.0
  %v1518 = vand.u32 %v32, 4294901760
  %1519 = vmatpush1.msra.mxu0 %v1518
  %1520 = vmatprep.subr.mxu0 0.0
  %v1521 = vand.u32 %v33, 4294901760
  %1522 = vmatpush1.msra.mxu0 %v1521
  %1523 = vmatprep.subr.mxu0 0.0
  %v1524 = vand.u32 %v34, 4294901760
  %1525 = vmatpush1.msra.mxu0 %v1524
  %1526 = vmatprep.subr.mxu0 0.0
  %v1527 = vand.u32 %v35, 4294901760
  %1528 = vmatpush1.msra.mxu0 %v1527
  %1529 = vmatprep.subr.mxu0 0.0
  %v1530 = vand.u32 %v36, 4294901760
  %1531 = vmatpush1.msra.mxu0 %v1530
  %1532 = vmatprep.subr.mxu0 0.0
  %1533 = vmatpush1.msra.mxu0 0.0
  %1534 = vmatprep.subr.mxu0 0.0
  %1535 = vmatpush1.msra.mxu0 0.0
  %1536 = vmatprep.subr.mxu0 0.0
  %1537 = vmatpush1.msra.mxu0 0.0
  %1538 = vmatprep.subr.mxu0 0.0
  %1539 = vmatpush1.msra.mxu0 0.0
  %1540 = vmatprep.subr.mxu0 0.0
  %1541 = vmatpush1.msra.mxu0 0.0
  %1542 = vmatprep.subr.mxu0 0.0
  %1543 = vmatpush1.msra.mxu0 0.0
  %1544 = vmatprep.subr.mxu0 0.0
  %1545 = vmatpush1.msra.mxu0 0.0
  %1546 = vmatprep.subr.mxu0 0.0
  %1547 = vmatpush1.msra.mxu0 0.0
  %1548 = vmatprep.subr.mxu0 0.0
  %1549 = vmatpush1.msra.mxu0 0.0
  %1550 = vmatprep.subr.mxu0 0.0
  %1551 = vmatpush1.msra.mxu0 0.0
  %1552 = vmatprep.subr.mxu0 0.0
  %1553 = vmatpush1.msra.mxu0 0.0
  %1554 = vmatprep.subr.mxu0 0.0
  %1555 = vmatpush1.msra.mxu0 0.0
  %1556 = vmatprep.subr.mxu0 0.0
  %1557 = vmatpush1.msra.mxu0 0.0
  %1558 = vmatprep.subr.mxu0 0.0
  %1559 = vmatpush1.msra.mxu0 0.0
  %1560 = vmatprep.subr.mxu0 0.0
  %1561 = vmatpush1.msra.mxu0 0.0
  %1562 = vmatprep.subr.mxu0 0.0
  %1563 = vmatpush1.msra.mxu0 0.0
  %1564 = vmatprep.mubr.f32.mxu0 0.0
  %v1565 = vand.u32 %v815, 4294901760
  %1566 = vmatmul.mubr.f32.gmra.mrb[0].mxu0 %v1565
  %v1567 = vpop.f32.mrb[0].mxu0
  %v1568 = vadd.f32 %v1463, %v1567
  %v1569 = vpop.f32.mrb[0].mxu0
  %1570 = vmatprep.mubr.f32.mxu0 0.0
  %v1571 = vand.u32 %v816, 4294901760
  %1572 = vmatmul.mubr.f32.gmra.mrb[0].mxu0 %v1571
  %v1573 = vpop.f32.mrb[0].mxu0
  %v1574 = vadd.f32 %v1469, %v1573
  %v1575 = vpop.f32.mrb[0].mxu0
  %1576 = vmatprep.mubr.f32.mxu0 0.0
  %v1577 = vand.u32 %v817, 4294901760
  %1578 = vmatmul.mubr.f32.gmra.mrb[0].mxu0 %v1577
  %v1579 = vpop.f32.mrb[0].mxu0
  %v1580 = vadd.f32 %v1475, %v1579
  %v1581 = vpop.f32.mrb[0].mxu0
  %1582 = vmatprep.mubr.f32.mxu0 0.0
  %v1583 = vand.u32 %v818, 4294901760
  %1584 = vmatmul.mubr.f32.gmra.mrb[0].mxu0 %v1583
  %v1585 = vpop.f32.mrb[0].mxu0
  %v1586 = vadd.f32 %v1481, %v1585
  %v1587 = vpop.f32.mrb[0].mxu0
  %1588 = vdwg.mxu0
  %v1589 = vmul.f32 %v1568, 0.03125
  %v1590 = vmul.f32 %v1574, 0.03125
  %v1591 = vmul.f32 %v1580, 0.03125
  %v1592 = vmul.f32 %v1586, 0.03125
  %v1593 = vadd.f32 %v1589, 1e-05
  %v1594 = vadd.f32 %v1590, 1e-05
  %v1595 = vadd.f32 %v1591, 1e-05
  %v1596 = vadd.f32 %v1592, 1e-05
  %v1597 = vrsqrt.pop %v1593
  %v1598 = vrsqrt.pop %v1594
  %v1599 = vrsqrt.pop %v1595
  %v1600 = vrsqrt.pop %v1596
  %v1601 = vmul.f32 %v811, %v1597
  %v1602 = vmul.f32 %v812, %v1598
  %v1603 = vmul.f32 %v813, %v1599
  %v1604 = vmul.f32 %v814, %v1600
  %v1605 = vld [vmem:[%s1] sm:$0x1]
  %v1607 = vlaneseq
  %v1608 = vshrl.u32 %v1607, 7
  %v1609 = vsub.s32 0, %v1608
  %v1610 = vrot.slane %v1605, %v1609
  %v1612 = vmul.f32 %v1601, %v1610
  %v1613 = vmul.f32 %v1602, %v1610
  %v1614 = vmul.f32 %v1603, %v1610
  %v1615 = vmul.f32 %v1604, %v1610
  %v1616 = vld [vmem:[%s2] sm:$0x1]
  %v1618 = vlaneseq
  %v1619 = vshrl.u32 %v1618, 7
  %v1620 = vsub.s32 0, %v1619
  %v1621 = vrot.slane %v1616, %v1620
  %v1623 = vadd.f32 %v1612, %v1621
  %v1624 = vadd.f32 %v1613, %v1621
  %v1625 = vadd.f32 %v1614, %v1621
  %v1626 = vadd.f32 %v1615, %v1621
  %1627 = vst [vmem:[%s4] sm:$0xff] %v1623
  %1628 = vst [vmem:[%s4 + $0x8] sm:$0xff] %v1624
  %1629 = vst [vmem:[%s4 + $0x10] sm:$0xff] %v1625
  %1630 = vst [vmem:[%s4 + $0x18] sm:$0xff] %v1626
  // Predicated region
  $region18: #{withbias_layernorm.1} parent=0 // pred_check
    _
  $region19: #{withbias_layernorm.1} parent=0 // pred_check_branch
    %1632 = sbr.rel (0) target = $region21
  $region20: #{withbias_layernorm.1} parent=0 // pred_region
    _
  $region21: #{withbias_layernorm.1} parent=0 // pred_fallthru
    _
  // Predicated region
  $region22: #{withbias_layernorm.1} parent=0 // pred_check
    _
  $region23: #{withbias_layernorm.1} parent=0 // pred_check_branch
    %1634 = sbr.rel (0) target = $region25
  $region24: #{withbias_layernorm.1} parent=0 // pred_region
    _
  $region25: #{withbias_layernorm.1} parent=0 // pred_fallthru
    _

</llo_original>
